<compile_context>
chip_gen: v6e
topology: v6e:2x2x1
jax: 0.10.0
libtpu: 0.0.40
codegen_flags: <defaults>
</compile_context>

<pallas_src>
import math
import functools

import jax
import jax.numpy as jnp
from jax import lax
from jax.experimental import pallas as pl
from jax.experimental.pallas import tpu as pltpu


# ----------------------------- in-kernel helpers -----------------------------

def _layernorm(h, g, b, eps=1e-5):
    mu = jnp.mean(h, axis=-1, keepdims=True)
    d = h - mu
    var = jnp.mean(d * d, axis=-1, keepdims=True)
    return d * lax.rsqrt(var + eps) * g + b


def _gelu_exact(x):
    # matches torch.nn.GELU() default (approximate='none')
    return 0.5 * x * (1.0 + lax.erf(x * (1.0 / math.sqrt(2.0))))


_BF16 = jnp.bfloat16


# ----------------------------- fused transformer kernel (all layers) -----------------------------

def gpt_kernel(x_ref, ln1g_ref, ln1b_ref, wqkv_ref, bqkv_ref,
               ln2g_ref, ln2b_ref, wfc_ref, bfc_ref, wpj_ref, bpj_ref,
               o_ref, x_vmem, *, n_head, n_layer):
    l = pl.program_id(1)

    # Load this sequence's activations into the VMEM carry at the first layer.
    @pl.when(l == 0)
    def _():
        x_vmem[...] = x_ref[0].astype(jnp.float32)

    x = x_vmem[...]                                   # (T, C) f32
    T, C = x.shape
    hd = C // n_head
    scale = 1.0 / math.sqrt(hd)

    # ----- attention branch: x + y  (attn c_proj output discarded, as in reference) -----
    h1 = _layernorm(x, ln1g_ref[0], ln1b_ref[0])
    qkv = jnp.dot(h1.astype(_BF16), wqkv_ref[0],
                  preferred_element_type=jnp.float32) + bqkv_ref[0]          # (T, 3C) f32

    # head-batched q/k/v: (H, T, hd)
    q = jnp.stack([qkv[:, h * hd:(h + 1) * hd] for h in range(n_head)], axis=0)
    k = jnp.stack([qkv[:, C + h * hd:C + (h + 1) * hd] for h in range(n_head)], axis=0)
    v = jnp.stack([qkv[:, 2 * C + h * hd:2 * C + (h + 1) * hd] for h in range(n_head)], axis=0)

    # scores: batched over heads, contract head_dim directly (no explicit transpose)
    s = jnp.einsum('htd,hsd->hts', q.astype(_BF16), k.astype(_BF16),
                   preferred_element_type=jnp.float32) * scale               # (H, T, T) f32
    row = lax.broadcasted_iota(jnp.int32, (n_head, T, T), 1)
    col = lax.broadcasted_iota(jnp.int32, (n_head, T, T), 2)
    s = jnp.where(row >= col, s, jnp.float32(-1e30))
    s = s - jnp.max(s, axis=-1, keepdims=True)
    p = jnp.exp(s)
    p = p * pl.reciprocal(jnp.sum(p, axis=-1, keepdims=True), approx=True)   # EUP divide

    y = jnp.einsum('hts,hsd->htd', p.astype(_BF16), v.astype(_BF16),
                   preferred_element_type=jnp.float32)                       # (H, T, hd) f32
    y_flat = jnp.concatenate([y[h] for h in range(n_head)], axis=-1)         # (T, C)
    x1 = x + y_flat

    # ----- MLP branch: x + c_proj(gelu(c_fc(ln_2(x)))) -----
    h2 = _layernorm(x1, ln2g_ref[0], ln2b_ref[0])
    f = jnp.dot(h2.astype(_BF16), wfc_ref[0],
                preferred_element_type=jnp.float32) + bfc_ref[0]             # (T, 4C)
    g = _gelu_exact(f)
    m = jnp.dot(g.astype(_BF16), wpj_ref[0],
                preferred_element_type=jnp.float32) + bpj_ref[0]             # (T, C)

    x2 = x1 + m
    x_vmem[...] = x2

    @pl.when(l == n_layer - 1)
    def _():
        o_ref[0] = x2.astype(o_ref.dtype)


def run_transformer(x, sp, n_head, n_layer):
    B, T, C = x.shape
    wmap = lambda b, l: (l, 0, 0)
    return pl.pallas_call(
        functools.partial(gpt_kernel, n_head=n_head, n_layer=n_layer),
        out_shape=jax.ShapeDtypeStruct((B, T, C), jnp.float32),
        grid=(B, n_layer),
        in_specs=[
            pl.BlockSpec((1, T, C), lambda b, l: (b, 0, 0)),                   # activations
            pl.BlockSpec((1, 1, C), wmap), pl.BlockSpec((1, 1, C), wmap),      # ln_1 g, b
            pl.BlockSpec((1, C, 3 * C), wmap), pl.BlockSpec((1, 1, 3 * C), wmap),  # c_attn W, b
            pl.BlockSpec((1, 1, C), wmap), pl.BlockSpec((1, 1, C), wmap),      # ln_2 g, b
            pl.BlockSpec((1, C, 4 * C), wmap), pl.BlockSpec((1, 1, 4 * C), wmap),  # mlp c_fc W, b
            pl.BlockSpec((1, 4 * C, C), wmap), pl.BlockSpec((1, 1, C), wmap),      # mlp c_proj W, b
        ],
        out_specs=pl.BlockSpec((1, T, C), lambda b, l: (b, 0, 0)),
        scratch_shapes=[pltpu.VMEM((T, C), jnp.float32)],                      # layer-to-layer carry
        compiler_params=pltpu.CompilerParams(
            dimension_semantics=("parallel", "arbitrary"),
            vmem_limit_bytes=64 * 1024 * 1024),
    )(x, sp["ln1_g"], sp["ln1_b"], sp["w_qkv"], sp["b_qkv"],
      sp["ln2_g"], sp["ln2_b"], sp["w_fc"], sp["b_fc"], sp["w_mproj"], sp["b_mproj"])


# ----------------------------- final ln_f + lm_head kernel -----------------------------

def head_kernel(x_ref, lnfg_ref, lnfb_ref, whead_ref, o_ref):
    h = _layernorm(x_ref[...].astype(jnp.float32), lnfg_ref[0], lnfb_ref[0])   # (B, C)
    o_ref[...] = jnp.dot(h.astype(_BF16), whead_ref[...],
                         preferred_element_type=jnp.float32).astype(o_ref.dtype)


def run_head(x_last, lnf_g, lnf_b, w_head):
    B, C = x_last.shape
    V = w_head.shape[1]
    # vocab tile: largest 128-multiple divisor (lane-dense, pipelined weight DMA),
    # otherwise the full (small) vocab in one block.
    tv = V
    for cand in (4096, 2048, 1024, 512, 256, 128):
        if V % cand == 0:
            tv = cand
            break
    return pl.pallas_call(
        head_kernel,
        out_shape=jax.ShapeDtypeStruct((B, V), jnp.float32),
        grid=(V // tv,),
        in_specs=[
            pl.BlockSpec((B, C), lambda v: (0, 0)),
            pl.BlockSpec((1, C), lambda v: (0, 0)),
            pl.BlockSpec((1, C), lambda v: (0, 0)),
            pl.BlockSpec((C, tv), lambda v: (0, v)),
        ],
        out_specs=pl.BlockSpec((B, tv), lambda v: (0, v)),
        compiler_params=pltpu.CompilerParams(
            dimension_semantics=("parallel",),
            vmem_limit_bytes=64 * 1024 * 1024),
    )(x_last, lnf_g, lnf_b, w_head)


# ----------------------------- model forward (glue in plain JAX) -----------------------------

def model_forward(token_ids, params, cfg):
    # Embedding gathers are data-dependent lookups; kept as plain JAX glue.
    t_emb = params["wte"][token_ids]            # (B, T, C)
    p_emb = params["wpe"][token_ids]            # reference quirk: wpe indexed by token ids
    x = (t_emb + p_emb).astype(jnp.float32)     # drop() is identity at inference
    x = run_transformer(x, params["stacked"], cfg["n_head"], cfg["n_layer"])
    x_last = x[:, -1, :]                        # target=None path: only last position
    logits = run_head(x_last, params["lnf_g"], params["lnf_b"], params["w_head"])
    return logits[:, None, :], None             # (B, 1, V), loss=None


# ----------------------------- deterministic parameter init -----------------------------

def init_params(key, cfg):
    C, V, L, BS = cfg["n_embd"], cfg["vocab_size"], cfg["n_layer"], cfg["block_size"]
    k = jax.random.split(key, 6)
    nrm = lambda kk, shape, s: s * jax.random.normal(kk, shape, jnp.float32)
    std_proj = 0.02 / math.sqrt(2 * L)          # c_proj.weight special init

    # Per-layer params stacked with a leading L axis; weights stored bf16 (MXU fast path,
    # half the HBM/VMEM traffic), LN params and biases kept f32.
    stacked = dict(
        ln1_g=jnp.ones((L, 1, C), jnp.float32),
        ln1_b=jnp.zeros((L, 1, C), jnp.float32),
        w_qkv=nrm(k[0], (L, C, 3 * C), 0.02).astype(_BF16),
        b_qkv=jnp.zeros((L, 1, 3 * C), jnp.float32),
        ln2_g=jnp.ones((L, 1, C), jnp.float32),
        ln2_b=jnp.zeros((L, 1, C), jnp.float32),
        w_fc=nrm(k[1], (L, C, 4 * C), 0.02).astype(_BF16),
        b_fc=jnp.zeros((L, 1, 4 * C), jnp.float32),
        w_mproj=nrm(k[2], (L, 4 * C, C), std_proj).astype(_BF16),
        b_mproj=jnp.zeros((L, 1, C), jnp.float32),
        # NOTE: attention c_proj params omitted — the reference forward discards its output.
    )
    return dict(
        wte=nrm(k[3], (V, C), 0.02),
        wpe=nrm(k[4], (BS, C), 0.02),
        lnf_g=jnp.ones((1, C), jnp.float32),
        lnf_b=jnp.zeros((1, C), jnp.float32),
        w_head=nrm(k[5], (C, V), 0.02).astype(_BF16),   # lm_head, bias=False
        stacked=stacked,
    )


# ----------------------------- main -----------------------------

if __name__ == "__main__":
    cfg = dict(vocab_size=64, block_size=64, n_embd=32, n_head=4,
               n_layer=2, dropout=0.0, bias=True)
    key = jax.random.PRNGKey(0)
    pkey, dkey = jax.random.split(key)
    params = init_params(pkey, cfg)

    B, T = 2, 8
    tokens = jax.random.randint(dkey, (B, T), 0, cfg["vocab_size"], dtype=jnp.int32)

    logits, loss = model_forward(tokens, params, cfg)
    logits = jax.block_until_ready(logits)
    assert logits.shape == (B, 1, cfg["vocab_size"])
    assert loss is None
    # TODO(synk): generate()'s multinomial sampling loop is host-side control flow, not kernelized.
    # TODO(synk): for block_size >~1-2k switch the in-kernel attention to a KV-tiled flash softmax.
    print("KERNEL_OK")
</pallas_src>

<mosaic_0001>
module attributes {stable_mosaic.version = 11 : i64} {
  func.func @gpt_kernel(%arg0: i32, %arg1: i32, %arg2: memref<1x8x32xf32, #tpu.memory_space<vmem>>, %arg3: memref<1x1x32xf32, #tpu.memory_space<vmem>>, %arg4: memref<1x1x32xf32, #tpu.memory_space<vmem>>, %arg5: memref<1x32x96xbf16, #tpu.memory_space<vmem>>, %arg6: memref<1x1x96xf32, #tpu.memory_space<vmem>>, %arg7: memref<1x1x32xf32, #tpu.memory_space<vmem>>, %arg8: memref<1x1x32xf32, #tpu.memory_space<vmem>>, %arg9: memref<1x32x128xbf16, #tpu.memory_space<vmem>>, %arg10: memref<1x1x128xf32, #tpu.memory_space<vmem>>, %arg11: memref<1x128x32xbf16, #tpu.memory_space<vmem>>, %arg12: memref<1x1x32xf32, #tpu.memory_space<vmem>>, %arg13: memref<1x8x32xf32, #tpu.memory_space<vmem>>, %arg14: memref<8x32xf32, #tpu.memory_space<vmem>>) attributes {dimension_semantics = [#tpu.dimension_semantics<parallel>, #tpu.dimension_semantics<arbitrary>], iteration_bounds = array<i64: 2, 2>, scalar_prefetch = 0 : i64, scratch_operands = 1 : i64, tpu.core_type = #tpu.core_type<tc>, window_params = [{transform_indices = @transform_0, window_bounds = array<i64: 1, 8, 32>}, {transform_indices = @transform_1, window_bounds = array<i64: 1, 1, 32>}, {transform_indices = @transform_2, window_bounds = array<i64: 1, 1, 32>}, {transform_indices = @transform_3, window_bounds = array<i64: 1, 32, 96>}, {transform_indices = @transform_4, window_bounds = array<i64: 1, 1, 96>}, {transform_indices = @transform_5, window_bounds = array<i64: 1, 1, 32>}, {transform_indices = @transform_6, window_bounds = array<i64: 1, 1, 32>}, {transform_indices = @transform_7, window_bounds = array<i64: 1, 32, 128>}, {transform_indices = @transform_8, window_bounds = array<i64: 1, 1, 128>}, {transform_indices = @transform_9, window_bounds = array<i64: 1, 128, 32>}, {transform_indices = @transform_10, window_bounds = array<i64: 1, 1, 32>}, {transform_indices = @transform_11, window_bounds = array<i64: 1, 8, 32>}]} {
    %c0_i32 = arith.constant 0 : i32
    %0 = arith.cmpi eq, %arg1, %c0_i32 : i32
    %1 = arith.extui %0 : i1 to i32
    %c0_i32_0 = arith.constant 0 : i32
    %2 = arith.cmpi ne, %1, %c0_i32_0 : i32
    scf.if %2 {
      %c0_56 = arith.constant 0 : index
      %c0_57 = arith.constant 0 : index
      %c0_58 = arith.constant 0 : index
      %149 = vector.load %arg2[%c0_56, %c0_57, %c0_58] : memref<1x8x32xf32, #tpu.memory_space<vmem>>, vector<1x8x32xf32>
      %150 = vector.shape_cast %149 : vector<1x8x32xf32> to vector<8x32xf32>
      %c0_59 = arith.constant 0 : index
      %c0_60 = arith.constant 0 : index
      %151 = vector.load %arg14[%c0_59, %c0_60] : memref<8x32xf32, #tpu.memory_space<vmem>>, vector<8x32xf32>
      tpu.vector_store %arg14[%c0_59, %c0_60], %150 {strides = array<i32>} : memref<8x32xf32, #tpu.memory_space<vmem>>, vector<8x32xf32>,
    } else {
    }
    %c0 = arith.constant 0 : index
    %c0_1 = arith.constant 0 : index
    %3 = vector.load %arg14[%c0, %c0_1] : memref<8x32xf32, #tpu.memory_space<vmem>>, vector<8x32xf32>
    %c0_2 = arith.constant 0 : index
    %c0_3 = arith.constant 0 : index
    %c0_4 = arith.constant 0 : index
    %4 = vector.load %arg3[%c0_2, %c0_3, %c0_4] : memref<1x1x32xf32, #tpu.memory_space<vmem>>, vector<1x1x32xf32>
    %5 = vector.shape_cast %4 : vector<1x1x32xf32> to vector<1x32xf32>
    %c0_5 = arith.constant 0 : index
    %c0_6 = arith.constant 0 : index
    %c0_7 = arith.constant 0 : index
    %6 = vector.load %arg4[%c0_5, %c0_6, %c0_7] : memref<1x1x32xf32, #tpu.memory_space<vmem>>, vector<1x1x32xf32>
    %7 = vector.shape_cast %6 : vector<1x1x32xf32> to vector<1x32xf32>
    %cst = arith.constant dense<0.000000e+00> : vector<8xf32>
    %8 = vector.multi_reduction <add>, %3, %cst [1] : vector<8x32xf32> to vector<8xf32>
    %9 = vector.shape_cast %8 : vector<8xf32> to vector<8x1xf32>
    %cst_8 = arith.constant 3.200000e+01 : f32
    %10 = vector.broadcast %cst_8 : f32 to vector<8x1xf32>
    %11 = arith.divf %9, %10 : vector<8x1xf32>
    %12 = vector.broadcast %11 : vector<8x1xf32> to vector<8x32xf32>
    %13 = arith.subf %3, %12 : vector<8x32xf32>
    %14 = arith.mulf %13, %13 : vector<8x32xf32>
    %cst_9 = arith.constant dense<0.000000e+00> : vector<8xf32>
    %15 = vector.multi_reduction <add>, %14, %cst_9 [1] : vector<8x32xf32> to vector<8xf32>
    %16 = vector.shape_cast %15 : vector<8xf32> to vector<8x1xf32>
    %cst_10 = arith.constant 3.200000e+01 : f32
    %17 = vector.broadcast %cst_10 : f32 to vector<8x1xf32>
    %18 = arith.divf %16, %17 : vector<8x1xf32>
    %cst_11 = arith.constant 9.99999974E-6 : f32
    %19 = vector.broadcast %cst_11 : f32 to vector<8x1xf32>
    %20 = arith.addf %18, %19 : vector<8x1xf32>
    %21 = math.rsqrt %20 : vector<8x1xf32>
    %22 = vector.broadcast %21 : vector<8x1xf32> to vector<8x32xf32>
    %23 = arith.mulf %13, %22 : vector<8x32xf32>
    %24 = vector.broadcast %5 : vector<1x32xf32> to vector<8x32xf32>
    %25 = arith.mulf %23, %24 : vector<8x32xf32>
    %26 = vector.broadcast %7 : vector<1x32xf32> to vector<8x32xf32>
    %27 = arith.addf %25, %26 : vector<8x32xf32>
    %28 = arith.truncf %27 : vector<8x32xf32> to vector<8x32xbf16>
    %c0_12 = arith.constant 0 : index
    %c0_13 = arith.constant 0 : index
    %c0_14 = arith.constant 0 : index
    %29 = vector.load %arg5[%c0_12, %c0_13, %c0_14] : memref<1x32x96xbf16, #tpu.memory_space<vmem>>, vector<1x32x96xbf16>
    %30 = vector.shape_cast %29 : vector<1x32x96xbf16> to vector<32x96xbf16>
    %cst_15 = arith.constant dense<0.000000e+00> : vector<8x96xf32>
    %31 = tpu.matmul %28, %30, %cst_15 {dimension_numbers = #tpu.dot_dimension_numbers<[1], [0], [0], [1], [0, 0, 1, 1], [], []>} : vector<8x32xbf16>, vector<32x96xbf16>, vector<8x96xf32> -> vector<8x96xf32>
    %c0_16 = arith.constant 0 : index
    %c0_17 = arith.constant 0 : index
    %c0_18 = arith.constant 0 : index
    %32 = vector.load %arg6[%c0_16, %c0_17, %c0_18] : memref<1x1x96xf32, #tpu.memory_space<vmem>>, vector<1x1x96xf32>
    %33 = vector.shape_cast %32 : vector<1x1x96xf32> to vector<1x96xf32>
    %34 = vector.broadcast %33 : vector<1x96xf32> to vector<8x96xf32>
    %35 = arith.addf %31, %34 : vector<8x96xf32>
    %36 = vector.extract_strided_slice %35 {offsets = [0, 0], sizes = [8, 8], strides = [1, 1]} : vector<8x96xf32> to vector<8x8xf32>
    %37 = vector.extract_strided_slice %35 {offsets = [0, 8], sizes = [8, 8], strides = [1, 1]} : vector<8x96xf32> to vector<8x8xf32>
    %38 = vector.extract_strided_slice %35 {offsets = [0, 16], sizes = [8, 8], strides = [1, 1]} : vector<8x96xf32> to vector<8x8xf32>
    %39 = vector.extract_strided_slice %35 {offsets = [0, 24], sizes = [8, 8], strides = [1, 1]} : vector<8x96xf32> to vector<8x8xf32>
    %40 = vector.shape_cast %36 : vector<8x8xf32> to vector<1x8x8xf32>
    %41 = vector.shape_cast %37 : vector<8x8xf32> to vector<1x8x8xf32>
    %42 = vector.shape_cast %38 : vector<8x8xf32> to vector<1x8x8xf32>
    %43 = vector.shape_cast %39 : vector<8x8xf32> to vector<1x8x8xf32>
    %44 = tpu.concatenate %40, %41, %42, %43 in 0 : vector<1x8x8xf32>, vector<1x8x8xf32>, vector<1x8x8xf32>, vector<1x8x8xf32> -> vector<4x8x8xf32>
    %45 = vector.extract_strided_slice %35 {offsets = [0, 32], sizes = [8, 8], strides = [1, 1]} : vector<8x96xf32> to vector<8x8xf32>
    %46 = vector.extract_strided_slice %35 {offsets = [0, 40], sizes = [8, 8], strides = [1, 1]} : vector<8x96xf32> to vector<8x8xf32>
    %47 = vector.extract_strided_slice %35 {offsets = [0, 48], sizes = [8, 8], strides = [1, 1]} : vector<8x96xf32> to vector<8x8xf32>
    %48 = vector.extract_strided_slice %35 {offsets = [0, 56], sizes = [8, 8], strides = [1, 1]} : vector<8x96xf32> to vector<8x8xf32>
    %49 = vector.shape_cast %45 : vector<8x8xf32> to vector<1x8x8xf32>
    %50 = vector.shape_cast %46 : vector<8x8xf32> to vector<1x8x8xf32>
    %51 = vector.shape_cast %47 : vector<8x8xf32> to vector<1x8x8xf32>
    %52 = vector.shape_cast %48 : vector<8x8xf32> to vector<1x8x8xf32>
    %53 = tpu.concatenate %49, %50, %51, %52 in 0 : vector<1x8x8xf32>, vector<1x8x8xf32>, vector<1x8x8xf32>, vector<1x8x8xf32> -> vector<4x8x8xf32>
    %54 = vector.extract_strided_slice %35 {offsets = [0, 64], sizes = [8, 8], strides = [1, 1]} : vector<8x96xf32> to vector<8x8xf32>
    %55 = vector.extract_strided_slice %35 {offsets = [0, 72], sizes = [8, 8], strides = [1, 1]} : vector<8x96xf32> to vector<8x8xf32>
    %56 = vector.extract_strided_slice %35 {offsets = [0, 80], sizes = [8, 8], strides = [1, 1]} : vector<8x96xf32> to vector<8x8xf32>
    %57 = vector.extract_strided_slice %35 {offsets = [0, 88], sizes = [8, 8], strides = [1, 1]} : vector<8x96xf32> to vector<8x8xf32>
    %58 = vector.shape_cast %54 : vector<8x8xf32> to vector<1x8x8xf32>
    %59 = vector.shape_cast %55 : vector<8x8xf32> to vector<1x8x8xf32>
    %60 = vector.shape_cast %56 : vector<8x8xf32> to vector<1x8x8xf32>
    %61 = vector.shape_cast %57 : vector<8x8xf32> to vector<1x8x8xf32>
    %62 = tpu.concatenate %58, %59, %60, %61 in 0 : vector<1x8x8xf32>, vector<1x8x8xf32>, vector<1x8x8xf32>, vector<1x8x8xf32> -> vector<4x8x8xf32>
    %63 = arith.truncf %44 : vector<4x8x8xf32> to vector<4x8x8xbf16>
    %64 = arith.truncf %53 : vector<4x8x8xf32> to vector<4x8x8xbf16>
    "tpu.trace_start"() <{level = 10 : i32, message = "htd,hsd->hts"}> : () -> ()
    %cst_19 = arith.constant dense<0.000000e+00> : vector<4x8x8xf32>
    %65 = tpu.matmul %63, %64, %cst_19 {dimension_numbers = #tpu.dot_dimension_numbers<[2], [2], [1], [1], [0, 0, 0, 1, 1, 1], [0], [0]>} : vector<4x8x8xbf16>, vector<4x8x8xbf16>, vector<4x8x8xf32> -> vector<4x8x8xf32>
    "tpu.trace_stop"() : () -> ()
    %cst_20 = arith.constant 0.353553385 : f32
    %66 = vector.broadcast %cst_20 : f32 to vector<4x8x8xf32>
    %67 = arith.mulf %65, %66 : vector<4x8x8xf32>
    %68 = tpu.iota {dimensions = array<i32: 1>} : vector<4x8x8xi32>
    %69 = tpu.iota {dimensions = array<i32: 2>} : vector<4x8x8xi32>
    %70 = arith.cmpi sge, %68, %69 : vector<4x8x8xi32>
    %cst_21 = arith.constant -1.000000e+30 : f32
    %71 = vector.broadcast %cst_21 : f32 to vector<4x8x8xf32>
    %72 = arith.select %70, %67, %71 : vector<4x8x8xi1>, vector<4x8x8xf32>
    %cst_22 = arith.constant dense<0xFF800000> : vector<4x8xf32>
    %73 = vector.multi_reduction <maximumf>, %72, %cst_22 [2] : vector<4x8x8xf32> to vector<4x8xf32>
    %74 = vector.shape_cast %73 : vector<4x8xf32> to vector<4x8x1xf32>
    %75 = vector.broadcast %74 : vector<4x8x1xf32> to vector<4x8x8xf32>
    %76 = arith.subf %72, %75 : vector<4x8x8xf32>
    %77 = math.exp %76 : vector<4x8x8xf32>
    %cst_23 = arith.constant dense<0.000000e+00> : vector<4x8xf32>
    %78 = vector.multi_reduction <add>, %77, %cst_23 [2] : vector<4x8x8xf32> to vector<4x8xf32>
    %79 = vector.shape_cast %78 : vector<4x8xf32> to vector<4x8x1xf32>
    %80 = tpu.reciprocal %79 {approx = true} : vector<4x8x1xf32> -> vector<4x8x1xf32>
    %81 = vector.broadcast %80 : vector<4x8x1xf32> to vector<4x8x8xf32>
    %82 = arith.mulf %77, %81 : vector<4x8x8xf32>
    %83 = arith.truncf %82 : vector<4x8x8xf32> to vector<4x8x8xbf16>
    %84 = arith.truncf %62 : vector<4x8x8xf32> to vector<4x8x8xbf16>
    "tpu.trace_start"() <{level = 10 : i32, message = "hts,hsd->htd"}> : () -> ()
    %cst_24 = arith.constant dense<0.000000e+00> : vector<4x8x8xf32>
    %85 = tpu.matmul %83, %84, %cst_24 {dimension_numbers = #tpu.dot_dimension_numbers<[2], [1], [1], [2], [0, 0, 0, 1, 1, 2], [0], [0]>} : vector<4x8x8xbf16>, vector<4x8x8xbf16>, vector<4x8x8xf32> -> vector<4x8x8xf32>
    "tpu.trace_stop"() : () -> ()
    %86 = vector.extract_strided_slice %85 {offsets = [0, 0, 0], sizes = [1, 8, 8], strides = [1, 1, 1]} : vector<4x8x8xf32> to vector<1x8x8xf32>
    %87 = vector.shape_cast %86 : vector<1x8x8xf32> to vector<8x8xf32>
    %88 = vector.extract_strided_slice %85 {offsets = [1, 0, 0], sizes = [1, 8, 8], strides = [1, 1, 1]} : vector<4x8x8xf32> to vector<1x8x8xf32>
    %89 = vector.shape_cast %88 : vector<1x8x8xf32> to vector<8x8xf32>
    %90 = vector.extract_strided_slice %85 {offsets = [2, 0, 0], sizes = [1, 8, 8], strides = [1, 1, 1]} : vector<4x8x8xf32> to vector<1x8x8xf32>
    %91 = vector.shape_cast %90 : vector<1x8x8xf32> to vector<8x8xf32>
    %92 = vector.extract_strided_slice %85 {offsets = [3, 0, 0], sizes = [1, 8, 8], strides = [1, 1, 1]} : vector<4x8x8xf32> to vector<1x8x8xf32>
    %93 = vector.shape_cast %92 : vector<1x8x8xf32> to vector<8x8xf32>
    %94 = tpu.concatenate %87, %89, %91, %93 in 1 : vector<8x8xf32>, vector<8x8xf32>, vector<8x8xf32>, vector<8x8xf32> -> vector<8x32xf32>
    %95 = arith.addf %3, %94 : vector<8x32xf32>
    %c0_25 = arith.constant 0 : index
    %c0_26 = arith.constant 0 : index
    %c0_27 = arith.constant 0 : index
    %96 = vector.load %arg7[%c0_25, %c0_26, %c0_27] : memref<1x1x32xf32, #tpu.memory_space<vmem>>, vector<1x1x32xf32>
    %97 = vector.shape_cast %96 : vector<1x1x32xf32> to vector<1x32xf32>
    %c0_28 = arith.constant 0 : index
    %c0_29 = arith.constant 0 : index
    %c0_30 = arith.constant 0 : index
    %98 = vector.load %arg8[%c0_28, %c0_29, %c0_30] : memref<1x1x32xf32, #tpu.memory_space<vmem>>, vector<1x1x32xf32>
    %99 = vector.shape_cast %98 : vector<1x1x32xf32> to vector<1x32xf32>
    %cst_31 = arith.constant dense<0.000000e+00> : vector<8xf32>
    %100 = vector.multi_reduction <add>, %95, %cst_31 [1] : vector<8x32xf32> to vector<8xf32>
    %101 = vector.shape_cast %100 : vector<8xf32> to vector<8x1xf32>
    %cst_32 = arith.constant 3.200000e+01 : f32
    %102 = vector.broadcast %cst_32 : f32 to vector<8x1xf32>
    %103 = arith.divf %101, %102 : vector<8x1xf32>
    %104 = vector.broadcast %103 : vector<8x1xf32> to vector<8x32xf32>
    %105 = arith.subf %95, %104 : vector<8x32xf32>
    %106 = arith.mulf %105, %105 : vector<8x32xf32>
    %cst_33 = arith.constant dense<0.000000e+00> : vector<8xf32>
    %107 = vector.multi_reduction <add>, %106, %cst_33 [1] : vector<8x32xf32> to vector<8xf32>
    %108 = vector.shape_cast %107 : vector<8xf32> to vector<8x1xf32>
    %cst_34 = arith.constant 3.200000e+01 : f32
    %109 = vector.broadcast %cst_34 : f32 to vector<8x1xf32>
    %110 = arith.divf %108, %109 : vector<8x1xf32>
    %cst_35 = arith.constant 9.99999974E-6 : f32
    %111 = vector.broadcast %cst_35 : f32 to vector<8x1xf32>
    %112 = arith.addf %110, %111 : vector<8x1xf32>
    %113 = math.rsqrt %112 : vector<8x1xf32>
    %114 = vector.broadcast %113 : vector<8x1xf32> to vector<8x32xf32>
    %115 = arith.mulf %105, %114 : vector<8x32xf32>
    %116 = vector.broadcast %97 : vector<1x32xf32> to vector<8x32xf32>
    %117 = arith.mulf %115, %116 : vector<8x32xf32>
    %118 = vector.broadcast %99 : vector<1x32xf32> to vector<8x32xf32>
    %119 = arith.addf %117, %118 : vector<8x32xf32>
    %120 = arith.truncf %119 : vector<8x32xf32> to vector<8x32xbf16>
    %c0_36 = arith.constant 0 : index
    %c0_37 = arith.constant 0 : index
    %c0_38 = arith.constant 0 : index
    %121 = vector.load %arg9[%c0_36, %c0_37, %c0_38] : memref<1x32x128xbf16, #tpu.memory_space<vmem>>, vector<1x32x128xbf16>
    %122 = vector.shape_cast %121 : vector<1x32x128xbf16> to vector<32x128xbf16>
    %cst_39 = arith.constant dense<0.000000e+00> : vector<8x128xf32>
    %123 = tpu.matmul %120, %122, %cst_39 {dimension_numbers = #tpu.dot_dimension_numbers<[1], [0], [0], [1], [0, 0, 1, 1], [], []>} : vector<8x32xbf16>, vector<32x128xbf16>, vector<8x128xf32> -> vector<8x128xf32>
    %c0_40 = arith.constant 0 : index
    %c0_41 = arith.constant 0 : index
    %c0_42 = arith.constant 0 : index
    %124 = vector.load %arg10[%c0_40, %c0_41, %c0_42] : memref<1x1x128xf32, #tpu.memory_space<vmem>>, vector<1x1x128xf32>
    %125 = vector.shape_cast %124 : vector<1x1x128xf32> to vector<1x128xf32>
    %126 = vector.broadcast %125 : vector<1x128xf32> to vector<8x128xf32>
    %127 = arith.addf %123, %126 : vector<8x128xf32>
    %cst_43 = arith.constant 5.000000e-01 : f32
    %128 = vector.broadcast %cst_43 : f32 to vector<8x128xf32>
    %129 = arith.mulf %128, %127 : vector<8x128xf32>
    %cst_44 = arith.constant 0.707106769 : f32
    %130 = vector.broadcast %cst_44 : f32 to vector<8x128xf32>
    %131 = arith.mulf %127, %130 : vector<8x128xf32>
    %132 = math.erf %131 : vector<8x128xf32>
    %cst_45 = arith.constant 1.000000e+00 : f32
    %133 = vector.broadcast %cst_45 : f32 to vector<8x128xf32>
    %134 = arith.addf %133, %132 : vector<8x128xf32>
    %135 = arith.mulf %129, %134 : vector<8x128xf32>
    %136 = arith.truncf %135 : vector<8x128xf32> to vector<8x128xbf16>
    %c0_46 = arith.constant 0 : index
    %c0_47 = arith.constant 0 : index
    %c0_48 = arith.constant 0 : index
    %137 = vector.load %arg11[%c0_46, %c0_47, %c0_48] : memref<1x128x32xbf16, #tpu.memory_space<vmem>>, vector<1x128x32xbf16>
    %138 = vector.shape_cast %137 : vector<1x128x32xbf16> to vector<128x32xbf16>
    %cst_49 = arith.constant dense<0.000000e+00> : vector<8x32xf32>
    %139 = tpu.matmul %136, %138, %cst_49 {dimension_numbers = #tpu.dot_dimension_numbers<[1], [0], [0], [1], [0, 0, 1, 1], [], []>} : vector<8x128xbf16>, vector<128x32xbf16>, vector<8x32xf32> -> vector<8x32xf32>
    %c0_50 = arith.constant 0 : index
    %c0_51 = arith.constant 0 : index
    %c0_52 = arith.constant 0 : index
    %140 = vector.load %arg12[%c0_50, %c0_51, %c0_52] : memref<1x1x32xf32, #tpu.memory_space<vmem>>, vector<1x1x32xf32>
    %141 = vector.shape_cast %140 : vector<1x1x32xf32> to vector<1x32xf32>
    %142 = vector.broadcast %141 : vector<1x32xf32> to vector<8x32xf32>
    %143 = arith.addf %139, %142 : vector<8x32xf32>
    %144 = arith.addf %95, %143 : vector<8x32xf32>
    %c0_53 = arith.constant 0 : index
    %c0_54 = arith.constant 0 : index
    %145 = vector.load %arg14[%c0_53, %c0_54] : memref<8x32xf32, #tpu.memory_space<vmem>>, vector<8x32xf32>
    tpu.vector_store %arg14[%c0_53, %c0_54], %144 {strides = array<i32>} : memref<8x32xf32, #tpu.memory_space<vmem>>, vector<8x32xf32>,
    %c1_i32 = arith.constant 1 : i32
    %146 = arith.cmpi eq, %arg1, %c1_i32 : i32
    %147 = arith.extui %146 : i1 to i32
    %c0_i32_55 = arith.constant 0 : i32
    %148 = arith.cmpi ne, %147, %c0_i32_55 : i32
    scf.if %148 {
      %c0_56 = arith.constant 0 : index
      %c0_57 = arith.constant 0 : index
      %c0_58 = arith.constant 0 : index
      %149 = vector.load %arg13[%c0_56, %c0_57, %c0_58] : memref<1x8x32xf32, #tpu.memory_space<vmem>>, vector<1x8x32xf32>
      %150 = vector.shape_cast %149 : vector<1x8x32xf32> to vector<8x32xf32>
      %151 = vector.shape_cast %144 : vector<8x32xf32> to vector<1x8x32xf32>
      tpu.vector_store %arg13[%c0_56, %c0_57, %c0_58], %151 {strides = array<i32>} : memref<1x8x32xf32, #tpu.memory_space<vmem>>, vector<1x8x32xf32>,
    } else {
    }
    return
  }
  func.func @transform_0(%arg0: i32, %arg1: i32) -> (i32, i32, i32) {
    %c0_i32 = arith.constant 0 : i32
    %c0_i32_0 = arith.constant 0 : i32
    %c0_i32_1 = arith.constant 0 : i32
    return %arg0, %c0_i32, %c0_i32_0 : i32, i32, i32
  }
  func.func @transform_1(%arg0: i32, %arg1: i32) -> (i32, i32, i32) {
    %c0_i32 = arith.constant 0 : i32
    %c0_i32_0 = arith.constant 0 : i32
    %c0_i32_1 = arith.constant 0 : i32
    return %arg1, %c0_i32, %c0_i32_0 : i32, i32, i32
  }
  func.func @transform_2(%arg0: i32, %arg1: i32) -> (i32, i32, i32) {
    %c0_i32 = arith.constant 0 : i32
    %c0_i32_0 = arith.constant 0 : i32
    %c0_i32_1 = arith.constant 0 : i32
    return %arg1, %c0_i32, %c0_i32_0 : i32, i32, i32
  }
  func.func @transform_3(%arg0: i32, %arg1: i32) -> (i32, i32, i32) {
    %c0_i32 = arith.constant 0 : i32
    %c0_i32_0 = arith.constant 0 : i32
    %c0_i32_1 = arith.constant 0 : i32
    return %arg1, %c0_i32, %c0_i32_0 : i32, i32, i32
  }
  func.func @transform_4(%arg0: i32, %arg1: i32) -> (i32, i32, i32) {
    %c0_i32 = arith.constant 0 : i32
    %c0_i32_0 = arith.constant 0 : i32
    %c0_i32_1 = arith.constant 0 : i32
    return %arg1, %c0_i32, %c0_i32_0 : i32, i32, i32
  }
  func.func @transform_5(%arg0: i32, %arg1: i32) -> (i32, i32, i32) {
    %c0_i32 = arith.constant 0 : i32
    %c0_i32_0 = arith.constant 0 : i32
    %c0_i32_1 = arith.constant 0 : i32
    return %arg1, %c0_i32, %c0_i32_0 : i32, i32, i32
  }
  func.func @transform_6(%arg0: i32, %arg1: i32) -> (i32, i32, i32) {
    %c0_i32 = arith.constant 0 : i32
    %c0_i32_0 = arith.constant 0 : i32
    %c0_i32_1 = arith.constant 0 : i32
    return %arg1, %c0_i32, %c0_i32_0 : i32, i32, i32
  }
  func.func @transform_7(%arg0: i32, %arg1: i32) -> (i32, i32, i32) {
    %c0_i32 = arith.constant 0 : i32
    %c0_i32_0 = arith.constant 0 : i32
    %c0_i32_1 = arith.constant 0 : i32
    return %arg1, %c0_i32, %c0_i32_0 : i32, i32, i32
  }
  func.func @transform_8(%arg0: i32, %arg1: i32) -> (i32, i32, i32) {
    %c0_i32 = arith.constant 0 : i32
    %c0_i32_0 = arith.constant 0 : i32
    %c0_i32_1 = arith.constant 0 : i32
    return %arg1, %c0_i32, %c0_i32_0 : i32, i32, i32
  }
  func.func @transform_9(%arg0: i32, %arg1: i32) -> (i32, i32, i32) {
    %c0_i32 = arith.constant 0 : i32
    %c0_i32_0 = arith.constant 0 : i32
    %c0_i32_1 = arith.constant 0 : i32
    return %arg1, %c0_i32, %c0_i32_0 : i32, i32, i32
  }
  func.func @transform_10(%arg0: i32, %arg1: i32) -> (i32, i32, i32) {
    %c0_i32 = arith.constant 0 : i32
    %c0_i32_0 = arith.constant 0 : i32
    %c0_i32_1 = arith.constant 0 : i32
    return %arg1, %c0_i32, %c0_i32_0 : i32, i32, i32
  }
  func.func @transform_11(%arg0: i32, %arg1: i32) -> (i32, i32, i32) {
    %c0_i32 = arith.constant 0 : i32
    %c0_i32_0 = arith.constant 0 : i32
    %c0_i32_1 = arith.constant 0 : i32
    return %arg0, %c0_i32, %c0_i32_0 : i32, i32, i32
  }
}

</mosaic_0001>

<llo_original>
// kernel: tpu_custom_call.1
$region0: #{tpu_custom_call.1}
  #allocation0 [shape = 'u32[]', space=smem, size = 0x4, offset = 0x4, fixed_abs, tag = 'smem constant byte address 0x4 - core index']
  #allocation1 [shape = 'u32[144,128]{1,0:T(1,128)}', space=vmem, size = 0x12000, scoped, tag = 'internal scratch']
  #allocation2 [shape = 'f32[8,32]{1,0:T(8,128)}', space=vmem, size = 0x1000, scoped, tag = 'scratch operand']
  %s0 = inlined_call_operand.vmem [shape: f32[2,8,32], index: 0, kind: input, shape index: {}]
  %s1 = inlined_call_operand.vmem [shape: f32[2,1,32], index: 1, kind: input, shape index: {}]
  %s2 = inlined_call_operand.vmem [shape: f32[2,1,32], index: 2, kind: input, shape index: {}]
  %s3 = inlined_call_operand.vmem [shape: bf16[2,32,96], index: 3, kind: input, shape index: {}]
  %s4 = inlined_call_operand.vmem [shape: f32[2,1,96], index: 4, kind: input, shape index: {}]
  %s5 = inlined_call_operand.vmem [shape: f32[2,1,32], index: 5, kind: input, shape index: {}]
  %s6 = inlined_call_operand.vmem [shape: f32[2,1,32], index: 6, kind: input, shape index: {}]
  %s7 = inlined_call_operand.vmem [shape: bf16[2,32,128], index: 7, kind: input, shape index: {}]
  %s8 = inlined_call_operand.vmem [shape: f32[2,1,128], index: 8, kind: input, shape index: {}]
  %s9 = inlined_call_operand.vmem [shape: bf16[2,128,32], index: 9, kind: input, shape index: {}]
  %s10 = inlined_call_operand.vmem [shape: f32[2,1,32], index: 10, kind: input, shape index: {}]
  %s11 = inlined_call_operand.hbm [shape: f32[2,8,32], index: 11, kind: output, shape index: {}]
  %s12 = sld [smem:[#allocation0]]
  $region85: #{tpu_custom_call.1} parent=0
    _
  %s14 = ssub.s32 1, %s12
  %s15 = scalar_select 0, %s14, %s12
  $region1: #{tpu_custom_call.1} parent=0
    #allocation3 [shape = 'u8[8192]{0}', space=vmem, size = 0x2000, scoped, tag = 'output window, operand 0']
    #allocation4 [shape = 's32[2]{0}', space=sflag, size = 0x8, scoped, tag = 'scoped memory for tpu_custom_call.1']
    %16 = vsyncpa [#allocation4], 0
    %s17 = scalar_lea.sflag [#allocation4], 1
    %18 = vsyncpa %s17, 0
    loop: start=0, step=1, limit=6
    $region2: #{tpu_custom_call.1} parent=1 // loop_pre_header
      _
    $region3: #{tpu_custom_call.1} parent=1 // loop_header
      %s20 = sphi 0, %s24
      %p21 = scmp.ge.s32.totalorder %s20, 6
      %s27 = sphi 0, %s39
      %s28 = sphi 0, %s35
      %s29 = sphi 0, %s27
      %s30 = sphi 0, %s28
      %s31 = sphi 0, %s29
      %s32 = sphi 0, %s30
      %s42 = sphi 0, %s44
      %s45 = sphi 0, %s42
      %s46 = sphi 0, %s45
      %s62 = sphi 0, %s46
      %s68 = sphi 0, %s70
      %s71 = sphi 0, %s68
      %s72 = sphi 0, %s71
      %s88 = sphi 0, %s72
      %s94 = sphi 0, %s96
      %s97 = sphi 0, %s94
      %s98 = sphi 0, %s97
      %s114 = sphi 0, %s98
      %s120 = sphi 0, %s122
      %s123 = sphi 0, %s120
      %s124 = sphi 0, %s123
      %s140 = sphi 0, %s124
      %s146 = sphi 0, %s148
      %s149 = sphi 0, %s146
      %s150 = sphi 0, %s149
      %s166 = sphi 0, %s150
      %s172 = sphi 0, %s174
      %s175 = sphi 0, %s172
      %s176 = sphi 0, %s175
      %s192 = sphi 0, %s176
      %s198 = sphi 0, %s200
      %s201 = sphi 0, %s198
      %s202 = sphi 0, %s201
      %s218 = sphi 0, %s202
      %s224 = sphi 0, %s226
      %s227 = sphi 0, %s224
      %s228 = sphi 0, %s227
      %s244 = sphi 0, %s228
      %s250 = sphi 0, %s252
      %s253 = sphi 0, %s250
      %s254 = sphi 0, %s253
      %s270 = sphi 0, %s254
      %s276 = sphi 0, %s278
      %s279 = sphi 0, %s276
      %s280 = sphi 0, %s279
      %s296 = sphi 0, %s280
      %s302 = sphi 0, %s304
      %s305 = sphi 0, %s302
      %s306 = sphi 0, %s305
      %s322 = sphi 0, %s306
      %s328 = sphi 0, %s330
      %s331 = sphi 0, %s328
      %s332 = sphi 0, %s331
      %s348 = sphi 0, %s332
    $region4: #{tpu_custom_call.1} parent=1 // loop_header_branch
      %23 = sbr.rel (%p21) target = $region8
    $region5: #{tpu_custom_call.1} parent=1 // loop_body
      %s25 = ssub.s32 %s20, 1
      %s26 = ssub.s32 %s20, 2
      %s33 = sadd.s32 1, %s28
      %p34 = scmp.ge.s32.totalorder %s33, 2
      %s35 = scalar_select %p34, 0, %s33
      %s36 = sadd.s32 1, %s27
      %s37 = scalar_select %p34, %s36, %s27
      %p38 = scmp.ge.s32.totalorder %s37, 2
      %s39 = scalar_select %p38, 0, %s37
      %s40 = ssub.s32 %s27, %s39
      %p41 = scmp.eq.s32.totalorder %s40, 0
      %s43 = sadd.s32 %s42, 1
      %s44 = scalar_select %p41, %s42, %s43
      %p47 = pneg %p41
      %p48 = scmp.eq.s32.totalorder %s20, 3
      %p49 = por %p47, %p48
      %p50 = scmp.ne.s32.totalorder %s42, %s45
      %p51 = scmp.eq.s32.totalorder %s20, 0
      %p52 = por %p50, %p51
      %p53 = scmp.ne.s32.totalorder %s42, %s45
      %p54 = scmp.eq.s32.totalorder %s25, 3
      %p55 = por %p53, %p54
      %p56 = scmp.ne.s32.totalorder %s45, %s46
      %p57 = scmp.eq.s32.totalorder %s25, 0
      %p58 = por %p56, %p57
      %p59 = scmp.ne.s32.totalorder %s45, %s46
      %p60 = scmp.eq.s32.totalorder %s26, 3
      %p61 = por %p59, %p60
      %p63 = scmp.ne.s32.totalorder %s46, %s62
      %p64 = scmp.eq.s32.totalorder %s26, 0
      %p65 = por %p63, %p64
      %s66 = ssub.s32 %s28, %s35
      %p67 = scmp.eq.s32.totalorder %s66, 0
      %s69 = sadd.s32 %s68, 1
      %s70 = scalar_select %p67, %s68, %s69
      %p73 = pneg %p67
      %p74 = scmp.eq.s32.totalorder %s20, 3
      %p75 = por %p73, %p74
      %p76 = scmp.ne.s32.totalorder %s68, %s71
      %p77 = scmp.eq.s32.totalorder %s20, 0
      %p78 = por %p76, %p77
      %p79 = scmp.ne.s32.totalorder %s68, %s71
      %p80 = scmp.eq.s32.totalorder %s25, 3
      %p81 = por %p79, %p80
      %p82 = scmp.ne.s32.totalorder %s71, %s72
      %p83 = scmp.eq.s32.totalorder %s25, 0
      %p84 = por %p82, %p83
      %p85 = scmp.ne.s32.totalorder %s71, %s72
      %p86 = scmp.eq.s32.totalorder %s26, 3
      %p87 = por %p85, %p86
      %p89 = scmp.ne.s32.totalorder %s72, %s88
      %p90 = scmp.eq.s32.totalorder %s26, 0
      %p91 = por %p89, %p90
      %s92 = ssub.s32 %s28, %s35
      %p93 = scmp.eq.s32.totalorder %s92, 0
      %s95 = sadd.s32 %s94, 1
      %s96 = scalar_select %p93, %s94, %s95
      %p99 = pneg %p93
      %p100 = scmp.eq.s32.totalorder %s20, 3
      %p101 = por %p99, %p100
      %p102 = scmp.ne.s32.totalorder %s94, %s97
      %p103 = scmp.eq.s32.totalorder %s20, 0
      %p104 = por %p102, %p103
      %p105 = scmp.ne.s32.totalorder %s94, %s97
      %p106 = scmp.eq.s32.totalorder %s25, 3
      %p107 = por %p105, %p106
      %p108 = scmp.ne.s32.totalorder %s97, %s98
      %p109 = scmp.eq.s32.totalorder %s25, 0
      %p110 = por %p108, %p109
      %p111 = scmp.ne.s32.totalorder %s97, %s98
      %p112 = scmp.eq.s32.totalorder %s26, 3
      %p113 = por %p111, %p112
      %p115 = scmp.ne.s32.totalorder %s98, %s114
      %p116 = scmp.eq.s32.totalorder %s26, 0
      %p117 = por %p115, %p116
      %s118 = ssub.s32 %s28, %s35
      %p119 = scmp.eq.s32.totalorder %s118, 0
      %s121 = sadd.s32 %s120, 1
      %s122 = scalar_select %p119, %s120, %s121
      %p125 = pneg %p119
      %p126 = scmp.eq.s32.totalorder %s20, 3
      %p127 = por %p125, %p126
      %p128 = scmp.ne.s32.totalorder %s120, %s123
      %p129 = scmp.eq.s32.totalorder %s20, 0
      %p130 = por %p128, %p129
      %p131 = scmp.ne.s32.totalorder %s120, %s123
      %p132 = scmp.eq.s32.totalorder %s25, 3
      %p133 = por %p131, %p132
      %p134 = scmp.ne.s32.totalorder %s123, %s124
      %p135 = scmp.eq.s32.totalorder %s25, 0
      %p136 = por %p134, %p135
      %p137 = scmp.ne.s32.totalorder %s123, %s124
      %p138 = scmp.eq.s32.totalorder %s26, 3
      %p139 = por %p137, %p138
      %p141 = scmp.ne.s32.totalorder %s124, %s140
      %p142 = scmp.eq.s32.totalorder %s26, 0
      %p143 = por %p141, %p142
      %s144 = ssub.s32 %s28, %s35
      %p145 = scmp.eq.s32.totalorder %s144, 0
      %s147 = sadd.s32 %s146, 1
      %s148 = scalar_select %p145, %s146, %s147
      %p151 = pneg %p145
      %p152 = scmp.eq.s32.totalorder %s20, 3
      %p153 = por %p151, %p152
      %p154 = scmp.ne.s32.totalorder %s146, %s149
      %p155 = scmp.eq.s32.totalorder %s20, 0
      %p156 = por %p154, %p155
      %p157 = scmp.ne.s32.totalorder %s146, %s149
      %p158 = scmp.eq.s32.totalorder %s25, 3
      %p159 = por %p157, %p158
      %p160 = scmp.ne.s32.totalorder %s149, %s150
      %p161 = scmp.eq.s32.totalorder %s25, 0
      %p162 = por %p160, %p161
      %p163 = scmp.ne.s32.totalorder %s149, %s150
      %p164 = scmp.eq.s32.totalorder %s26, 3
      %p165 = por %p163, %p164
      %p167 = scmp.ne.s32.totalorder %s150, %s166
      %p168 = scmp.eq.s32.totalorder %s26, 0
      %p169 = por %p167, %p168
      %s170 = ssub.s32 %s28, %s35
      %p171 = scmp.eq.s32.totalorder %s170, 0
      %s173 = sadd.s32 %s172, 1
      %s174 = scalar_select %p171, %s172, %s173
      %p177 = pneg %p171
      %p178 = scmp.eq.s32.totalorder %s20, 3
      %p179 = por %p177, %p178
      %p180 = scmp.ne.s32.totalorder %s172, %s175
      %p181 = scmp.eq.s32.totalorder %s20, 0
      %p182 = por %p180, %p181
      %p183 = scmp.ne.s32.totalorder %s172, %s175
      %p184 = scmp.eq.s32.totalorder %s25, 3
      %p185 = por %p183, %p184
      %p186 = scmp.ne.s32.totalorder %s175, %s176
      %p187 = scmp.eq.s32.totalorder %s25, 0
      %p188 = por %p186, %p187
      %p189 = scmp.ne.s32.totalorder %s175, %s176
      %p190 = scmp.eq.s32.totalorder %s26, 3
      %p191 = por %p189, %p190
      %p193 = scmp.ne.s32.totalorder %s176, %s192
      %p194 = scmp.eq.s32.totalorder %s26, 0
      %p195 = por %p193, %p194
      %s196 = ssub.s32 %s28, %s35
      %p197 = scmp.eq.s32.totalorder %s196, 0
      %s199 = sadd.s32 %s198, 1
      %s200 = scalar_select %p197, %s198, %s199
      %p203 = pneg %p197
      %p204 = scmp.eq.s32.totalorder %s20, 3
      %p205 = por %p203, %p204
      %p206 = scmp.ne.s32.totalorder %s198, %s201
      %p207 = scmp.eq.s32.totalorder %s20, 0
      %p208 = por %p206, %p207
      %p209 = scmp.ne.s32.totalorder %s198, %s201
      %p210 = scmp.eq.s32.totalorder %s25, 3
      %p211 = por %p209, %p210
      %p212 = scmp.ne.s32.totalorder %s201, %s202
      %p213 = scmp.eq.s32.totalorder %s25, 0
      %p214 = por %p212, %p213
      %p215 = scmp.ne.s32.totalorder %s201, %s202
      %p216 = scmp.eq.s32.totalorder %s26, 3
      %p217 = por %p215, %p216
      %p219 = scmp.ne.s32.totalorder %s202, %s218
      %p220 = scmp.eq.s32.totalorder %s26, 0
      %p221 = por %p219, %p220
      %s222 = ssub.s32 %s28, %s35
      %p223 = scmp.eq.s32.totalorder %s222, 0
      %s225 = sadd.s32 %s224, 1
      %s226 = scalar_select %p223, %s224, %s225
      %p229 = pneg %p223
      %p230 = scmp.eq.s32.totalorder %s20, 3
      %p231 = por %p229, %p230
      %p232 = scmp.ne.s32.totalorder %s224, %s227
      %p233 = scmp.eq.s32.totalorder %s20, 0
      %p234 = por %p232, %p233
      %p235 = scmp.ne.s32.totalorder %s224, %s227
      %p236 = scmp.eq.s32.totalorder %s25, 3
      %p237 = por %p235, %p236
      %p238 = scmp.ne.s32.totalorder %s227, %s228
      %p239 = scmp.eq.s32.totalorder %s25, 0
      %p240 = por %p238, %p239
      %p241 = scmp.ne.s32.totalorder %s227, %s228
      %p242 = scmp.eq.s32.totalorder %s26, 3
      %p243 = por %p241, %p242
      %p245 = scmp.ne.s32.totalorder %s228, %s244
      %p246 = scmp.eq.s32.totalorder %s26, 0
      %p247 = por %p245, %p246
      %s248 = ssub.s32 %s28, %s35
      %p249 = scmp.eq.s32.totalorder %s248, 0
      %s251 = sadd.s32 %s250, 1
      %s252 = scalar_select %p249, %s250, %s251
      %p255 = pneg %p249
      %p256 = scmp.eq.s32.totalorder %s20, 3
      %p257 = por %p255, %p256
      %p258 = scmp.ne.s32.totalorder %s250, %s253
      %p259 = scmp.eq.s32.totalorder %s20, 0
      %p260 = por %p258, %p259
      %p261 = scmp.ne.s32.totalorder %s250, %s253
      %p262 = scmp.eq.s32.totalorder %s25, 3
      %p263 = por %p261, %p262
      %p264 = scmp.ne.s32.totalorder %s253, %s254
      %p265 = scmp.eq.s32.totalorder %s25, 0
      %p266 = por %p264, %p265
      %p267 = scmp.ne.s32.totalorder %s253, %s254
      %p268 = scmp.eq.s32.totalorder %s26, 3
      %p269 = por %p267, %p268
      %p271 = scmp.ne.s32.totalorder %s254, %s270
      %p272 = scmp.eq.s32.totalorder %s26, 0
      %p273 = por %p271, %p272
      %s274 = ssub.s32 %s28, %s35
      %p275 = scmp.eq.s32.totalorder %s274, 0
      %s277 = sadd.s32 %s276, 1
      %s278 = scalar_select %p275, %s276, %s277
      %p281 = pneg %p275
      %p282 = scmp.eq.s32.totalorder %s20, 3
      %p283 = por %p281, %p282
      %p284 = scmp.ne.s32.totalorder %s276, %s279
      %p285 = scmp.eq.s32.totalorder %s20, 0
      %p286 = por %p284, %p285
      %p287 = scmp.ne.s32.totalorder %s276, %s279
      %p288 = scmp.eq.s32.totalorder %s25, 3
      %p289 = por %p287, %p288
      %p290 = scmp.ne.s32.totalorder %s279, %s280
      %p291 = scmp.eq.s32.totalorder %s25, 0
      %p292 = por %p290, %p291
      %p293 = scmp.ne.s32.totalorder %s279, %s280
      %p294 = scmp.eq.s32.totalorder %s26, 3
      %p295 = por %p293, %p294
      %p297 = scmp.ne.s32.totalorder %s280, %s296
      %p298 = scmp.eq.s32.totalorder %s26, 0
      %p299 = por %p297, %p298
      %s300 = ssub.s32 %s28, %s35
      %p301 = scmp.eq.s32.totalorder %s300, 0
      %s303 = sadd.s32 %s302, 1
      %s304 = scalar_select %p301, %s302, %s303
      %p307 = pneg %p301
      %p308 = scmp.eq.s32.totalorder %s20, 3
      %p309 = por %p307, %p308
      %p310 = scmp.ne.s32.totalorder %s302, %s305
      %p311 = scmp.eq.s32.totalorder %s20, 0
      %p312 = por %p310, %p311
      %p313 = scmp.ne.s32.totalorder %s302, %s305
      %p314 = scmp.eq.s32.totalorder %s25, 3
      %p315 = por %p313, %p314
      %p316 = scmp.ne.s32.totalorder %s305, %s306
      %p317 = scmp.eq.s32.totalorder %s25, 0
      %p318 = por %p316, %p317
      %p319 = scmp.ne.s32.totalorder %s305, %s306
      %p320 = scmp.eq.s32.totalorder %s26, 3
      %p321 = por %p319, %p320
      %p323 = scmp.ne.s32.totalorder %s306, %s322
      %p324 = scmp.eq.s32.totalorder %s26, 0
      %p325 = por %p323, %p324
      %s326 = ssub.s32 %s27, %s39
      %p327 = scmp.eq.s32.totalorder %s326, 0
      %s329 = sadd.s32 %s328, 1
      %s330 = scalar_select %p327, %s328, %s329
      %p333 = pneg %p327
      %p334 = scmp.eq.s32.totalorder %s20, 3
      %p335 = por %p333, %p334
      %p336 = scmp.ne.s32.totalorder %s328, %s331
      %p337 = scmp.eq.s32.totalorder %s20, 0
      %p338 = por %p336, %p337
      %p339 = scmp.ne.s32.totalorder %s328, %s331
      %p340 = scmp.eq.s32.totalorder %s25, 3
      %p341 = por %p339, %p340
      %p342 = scmp.ne.s32.totalorder %s331, %s332
      %p343 = scmp.eq.s32.totalorder %s25, 0
      %p344 = por %p342, %p343
      %p345 = scmp.ne.s32.totalorder %s331, %s332
      %p346 = scmp.eq.s32.totalorder %s26, 3
      %p347 = por %p345, %p346
      %p349 = scmp.ne.s32.totalorder %s332, %s348
      %p350 = scmp.eq.s32.totalorder %s26, 0
      %p351 = por %p349, %p350
      %p352 = scmp.le.s32.totalorder 1, %s20
      %p353 = scmp.lt.s32.totalorder %s20, 5
      %p354 = pnand %p352, %p353
      %p355 = pneg %p354
      // Predicated region
      $region9: #{tpu_custom_call.1} parent=5 // pred_check
        _
      $region10: #{tpu_custom_call.1} parent=5 // pred_check_branch
        %357 = sbr.rel (%p354) target = $region12
      $region11: #{tpu_custom_call.1} parent=5 // pred_region
        %s358 = ssub.s32 %s20, 1
      $region12: #{tpu_custom_call.1} parent=5 // pred_fallthru
        _
      %p359 = scmp.lt.s32.totalorder %s20, 4
      // Predicated region
      $region13: #{tpu_custom_call.1} parent=5 // pred_check
        %p360 = pneg %p359
      $region14: #{tpu_custom_call.1} parent=5 // pred_check_branch
        %362 = sbr.rel (%p360) target = $region16
      $region15: #{tpu_custom_call.1} parent=5 // pred_region
        // Predicated region
        $region17: #{tpu_custom_call.1} parent=15 // pred_check
          %p363 = pneg %p52
        $region18: #{tpu_custom_call.1} parent=15 // pred_check_branch
          %365 = sbr.rel (%p363) target = $region20
        $region19: #{tpu_custom_call.1} parent=15 // pred_region
          %p366 = scmp.lt.s32.totalorder %s27, 1
          %s367 = scalar_select %p366, %s27, 1
          %s368 = smul.addr %s367, 8
          %s369 = scalar_lea.vmem %s0, %s368
        $region20: #{tpu_custom_call.1} parent=15 // pred_fallthru
          _
        // Predicated region
        $region21: #{tpu_custom_call.1} parent=15 // pred_check
          %p370 = pneg %p78
        $region22: #{tpu_custom_call.1} parent=15 // pred_check_branch
          %372 = sbr.rel (%p370) target = $region24
        $region23: #{tpu_custom_call.1} parent=15 // pred_region
          %p373 = scmp.lt.s32.totalorder %s28, 1
          %s374 = scalar_select %p373, %s28, 1
          %s375 = scalar_lea.vmem %s1, %s374
        $region24: #{tpu_custom_call.1} parent=15 // pred_fallthru
          _
        // Predicated region
        $region25: #{tpu_custom_call.1} parent=15 // pred_check
          %p376 = pneg %p104
        $region26: #{tpu_custom_call.1} parent=15 // pred_check_branch
          %378 = sbr.rel (%p376) target = $region28
        $region27: #{tpu_custom_call.1} parent=15 // pred_region
          %p379 = scmp.lt.s32.totalorder %s28, 1
          %s380 = scalar_select %p379, %s28, 1
          %s381 = scalar_lea.vmem %s2, %s380
        $region28: #{tpu_custom_call.1} parent=15 // pred_fallthru
          _
        // Predicated region
        $region29: #{tpu_custom_call.1} parent=15 // pred_check
          %p382 = pneg %p130
        $region30: #{tpu_custom_call.1} parent=15 // pred_check_branch
          %384 = sbr.rel (%p382) target = $region32
        $region31: #{tpu_custom_call.1} parent=15 // pred_region
          %p385 = scmp.lt.s32.totalorder %s28, 1
          %s386 = scalar_select %p385, %s28, 1
          %s387 = smul.addr %s386, 4
          %s388 = smul.addr %s387, 4
          %s389 = scalar_lea.vmem %s3, %s388
        $region32: #{tpu_custom_call.1} parent=15 // pred_fallthru
          _
        // Predicated region
        $region33: #{tpu_custom_call.1} parent=15 // pred_check
          %p390 = pneg %p156
        $region34: #{tpu_custom_call.1} parent=15 // pred_check_branch
          %392 = sbr.rel (%p390) target = $region36
        $region35: #{tpu_custom_call.1} parent=15 // pred_region
          %p393 = scmp.lt.s32.totalorder %s28, 1
          %s394 = scalar_select %p393, %s28, 1
          %s395 = scalar_lea.vmem %s4, %s394
        $region36: #{tpu_custom_call.1} parent=15 // pred_fallthru
          _
        // Predicated region
        $region37: #{tpu_custom_call.1} parent=15 // pred_check
          %p396 = pneg %p182
        $region38: #{tpu_custom_call.1} parent=15 // pred_check_branch
          %398 = sbr.rel (%p396) target = $region40
        $region39: #{tpu_custom_call.1} parent=15 // pred_region
          %p399 = scmp.lt.s32.totalorder %s28, 1
          %s400 = scalar_select %p399, %s28, 1
          %s401 = scalar_lea.vmem %s5, %s400
        $region40: #{tpu_custom_call.1} parent=15 // pred_fallthru
          _
        // Predicated region
        $region41: #{tpu_custom_call.1} parent=15 // pred_check
          %p402 = pneg %p208
        $region42: #{tpu_custom_call.1} parent=15 // pred_check_branch
          %404 = sbr.rel (%p402) target = $region44
        $region43: #{tpu_custom_call.1} parent=15 // pred_region
          %p405 = scmp.lt.s32.totalorder %s28, 1
          %s406 = scalar_select %p405, %s28, 1
          %s407 = scalar_lea.vmem %s6, %s406
        $region44: #{tpu_custom_call.1} parent=15 // pred_fallthru
          _
        // Predicated region
        $region45: #{tpu_custom_call.1} parent=15 // pred_check
          %p408 = pneg %p234
        $region46: #{tpu_custom_call.1} parent=15 // pred_check_branch
          %410 = sbr.rel (%p408) target = $region48
        $region47: #{tpu_custom_call.1} parent=15 // pred_region
          %p411 = scmp.lt.s32.totalorder %s28, 1
          %s412 = scalar_select %p411, %s28, 1
          %s413 = smul.addr %s412, 4
          %s414 = smul.addr %s413, 4
          %s415 = scalar_lea.vmem %s7, %s414
        $region48: #{tpu_custom_call.1} parent=15 // pred_fallthru
          _
        // Predicated region
        $region49: #{tpu_custom_call.1} parent=15 // pred_check
          %p416 = pneg %p260
        $region50: #{tpu_custom_call.1} parent=15 // pred_check_branch
          %418 = sbr.rel (%p416) target = $region52
        $region51: #{tpu_custom_call.1} parent=15 // pred_region
          %p419 = scmp.lt.s32.totalorder %s28, 1
          %s420 = scalar_select %p419, %s28, 1
          %s421 = scalar_lea.vmem %s8, %s420
        $region52: #{tpu_custom_call.1} parent=15 // pred_fallthru
          _
        // Predicated region
        $region53: #{tpu_custom_call.1} parent=15 // pred_check
          %p422 = pneg %p286
        $region54: #{tpu_custom_call.1} parent=15 // pred_check_branch
          %424 = sbr.rel (%p422) target = $region56
        $region55: #{tpu_custom_call.1} parent=15 // pred_region
          %p425 = scmp.lt.s32.totalorder %s28, 1
          %s426 = scalar_select %p425, %s28, 1
          %s427 = smul.addr %s426, 16
          %s428 = smul.addr %s427, 4
          %s429 = scalar_lea.vmem %s9, %s428
        $region56: #{tpu_custom_call.1} parent=15 // pred_fallthru
          _
        // Predicated region
        $region57: #{tpu_custom_call.1} parent=15 // pred_check
          %p430 = pneg %p312
        $region58: #{tpu_custom_call.1} parent=15 // pred_check_branch
          %432 = sbr.rel (%p430) target = $region60
        $region59: #{tpu_custom_call.1} parent=15 // pred_region
          %p433 = scmp.lt.s32.totalorder %s28, 1
          %s434 = scalar_select %p433, %s28, 1
          %s435 = scalar_lea.vmem %s10, %s434
        $region60: #{tpu_custom_call.1} parent=15 // pred_fallthru
          _
      $region16: #{tpu_custom_call.1} parent=5 // pred_fallthru
        _
      %p436 = scmp.le.s32.totalorder 1, %s20
      %p437 = scmp.lt.s32.totalorder %s20, 5
      %p438 = pnand %p436, %p437
      %p439 = pneg %p438
      // Predicated region
      $region61: #{tpu_custom_call.1} parent=5 // pred_check
        _
      $region62: #{tpu_custom_call.1} parent=5 // pred_check_branch
        %441 = sbr.rel (%p438) target = $region64
      $region63: #{tpu_custom_call.1} parent=5 // pred_region
        %s442 = ssub.s32 %s20, 1
        %p443 = scmp.lt.s32.totalorder %s29, 1
        %s444 = scalar_select %p443, %s29, 1
        %s445 = smul.addr %s444, 8
        %s446 = scalar_lea.vmem %s0, %s445
        %p447 = pneg %p58
        %p448 = pneg %p55
        %p449 = scmp.lt.s32.totalorder %s30, 1
        %s450 = scalar_select %p449, %s30, 1
        %s451 = scalar_lea.vmem %s1, %s450
        %p452 = pneg %p84
        %p453 = pneg %p81
        %p454 = scmp.lt.s32.totalorder %s30, 1
        %s455 = scalar_select %p454, %s30, 1
        %s456 = scalar_lea.vmem %s2, %s455
        %p457 = pneg %p110
        %p458 = pneg %p107
        %p459 = scmp.lt.s32.totalorder %s30, 1
        %s460 = scalar_select %p459, %s30, 1
        %s461 = smul.addr %s460, 4
        %s462 = smul.addr %s461, 4
        %s463 = scalar_lea.vmem %s3, %s462
        %p464 = pneg %p136
        %p465 = pneg %p133
        %p466 = scmp.lt.s32.totalorder %s30, 1
        %s467 = scalar_select %p466, %s30, 1
        %s468 = scalar_lea.vmem %s4, %s467
        %p469 = pneg %p162
        %p470 = pneg %p159
        %p471 = scmp.lt.s32.totalorder %s30, 1
        %s472 = scalar_select %p471, %s30, 1
        %s473 = scalar_lea.vmem %s5, %s472
        %p474 = pneg %p188
        %p475 = pneg %p185
        %p476 = scmp.lt.s32.totalorder %s30, 1
        %s477 = scalar_select %p476, %s30, 1
        %s478 = scalar_lea.vmem %s6, %s477
        %p479 = pneg %p214
        %p480 = pneg %p211
        %p481 = scmp.lt.s32.totalorder %s30, 1
        %s482 = scalar_select %p481, %s30, 1
        %s483 = smul.addr %s482, 4
        %s484 = smul.addr %s483, 4
        %s485 = scalar_lea.vmem %s7, %s484
        %p486 = pneg %p240
        %p487 = pneg %p237
        %p488 = scmp.lt.s32.totalorder %s30, 1
        %s489 = scalar_select %p488, %s30, 1
        %s490 = scalar_lea.vmem %s8, %s489
        %p491 = pneg %p266
        %p492 = pneg %p263
        %p493 = scmp.lt.s32.totalorder %s30, 1
        %s494 = scalar_select %p493, %s30, 1
        %s495 = smul.addr %s494, 16
        %s496 = smul.addr %s495, 4
        %s497 = scalar_lea.vmem %s9, %s496
        %p498 = pneg %p292
        %p499 = pneg %p289
        %p500 = scmp.lt.s32.totalorder %s30, 1
        %s501 = scalar_select %p500, %s30, 1
        %s502 = scalar_lea.vmem %s10, %s501
        %p503 = pneg %p318
        %p504 = pneg %p315
        %p505 = pneg %p344
        %p506 = pneg %p341
        %s507 = sand.u32 %s331, 1
        %s508 = scalar_lea.sflag [#allocation4], %s507
        %s509 = sand.u32 %s331, 1
        %s510 = smul.addr %s509, 8
        %s511 = scalar_lea.vmem [#allocation3], %s510
        %p512 = scmp.lt.s32.totalorder %s29, 1
        %s513 = scalar_select %p512, %s29, 1
        %s514 = smul.addr %s513, 8
        %s515 = scalar_lea.vmem %s0, %s514
        %p516 = scmp.lt.s32.totalorder %s30, 1
        %s517 = scalar_select %p516, %s30, 1
        %s518 = scalar_lea.vmem %s1, %s517
        %p519 = scmp.lt.s32.totalorder %s30, 1
        %s520 = scalar_select %p519, %s30, 1
        %s521 = scalar_lea.vmem %s2, %s520
        %p522 = scmp.lt.s32.totalorder %s30, 1
        %s523 = scalar_select %p522, %s30, 1
        %s524 = smul.addr %s523, 4
        %s525 = smul.addr %s524, 4
        %s526 = scalar_lea.vmem %s3, %s525
        %p527 = scmp.lt.s32.totalorder %s30, 1
        %s528 = scalar_select %p527, %s30, 1
        %s529 = scalar_lea.vmem %s4, %s528
        %p530 = scmp.lt.s32.totalorder %s30, 1
        %s531 = scalar_select %p530, %s30, 1
        %s532 = scalar_lea.vmem %s5, %s531
        %p533 = scmp.lt.s32.totalorder %s30, 1
        %s534 = scalar_select %p533, %s30, 1
        %s535 = scalar_lea.vmem %s6, %s534
        %p536 = scmp.lt.s32.totalorder %s30, 1
        %s537 = scalar_select %p536, %s30, 1
        %s538 = smul.addr %s537, 4
        %s539 = smul.addr %s538, 4
        %s540 = scalar_lea.vmem %s7, %s539
        %p541 = scmp.lt.s32.totalorder %s30, 1
        %s542 = scalar_select %p541, %s30, 1
        %s543 = scalar_lea.vmem %s8, %s542
        %p544 = scmp.lt.s32.totalorder %s30, 1
        %s545 = scalar_select %p544, %s30, 1
        %s546 = smul.addr %s545, 16
        %s547 = smul.addr %s546, 4
        %s548 = scalar_lea.vmem %s9, %s547
        %p549 = scmp.lt.s32.totalorder %s30, 1
        %s550 = scalar_select %p549, %s30, 1
        %s551 = scalar_lea.vmem %s10, %s550
        %p553 = scmp.eq.s32.totalorder %s30, 0
        // Predicated region
        $region65: #{tpu_custom_call.1} parent=63 // pred_check
          %p554 = pneg %p553
        $region66: #{tpu_custom_call.1} parent=63 // pred_check_branch
          %556 = sbr.rel (%p554) target = $region68
        $region67: #{tpu_custom_call.1} parent=63 // pred_region
          %v557 = vld [vmem:[%s515] sm:$0xff]
          %vm558 = vcmask 261120
          %559 = vst.msk [vmem:[#allocation2] sm:$0xff] %vm558, %v557
        $region68: #{tpu_custom_call.1} parent=63 // pred_fallthru
          _
        %v560 = vld [vmem:[#allocation2] sm:$0xff]
        %v561 = vld [vmem:[%s518] sm:$0x1]
        %v562 = vld [vmem:[%s521] sm:$0x1]
        %vm563 = vcmask 261120
        %v564 = vsel %vm563, %v560, 0.0
        %565 = vadd.xlane.f32.xlu0 %v564
        %v566 = vpop.xlane.xlu0 %565
        %v567 = vrcp.pop 32.0
        %v568 = vmul.f32 %v566, %v567
        %v569 = vsub.f32 %v560, %v568
        %v570 = vmul.f32 %v569, %v569
        %v571 = vsel %vm563, %v570, 0.0
        %572 = vadd.xlane.f32.xlu0 %v571
        %v573 = vpop.xlane.xlu0 %572
        %v574 = vmul.f32 %v573, %v567
        %v575 = vadd.f32 %v574, 1e-05
        %v576 = vrsqrt.pop %v575
        %v577 = vmul.f32 %v569, %v576
        %v579 = vlaneseq
        %v580 = vshrl.u32 %v579, 7
        %v581 = vsub.s32 0, %v580
        %v582 = vrot.slane %v561, %v581
        %v584 = vmul.f32 %v577, %v582
        %v586 = vlaneseq
        %v587 = vshrl.u32 %v586, 7
        %v588 = vsub.s32 0, %v587
        %v589 = vrot.slane %v562, %v588
        %v591 = vadd.f32 %v584, %v589
        %v592 = vpack.c.bf16 %v591, %v591
        %v593 = vld [vmem:[%s526] sm:$0xf]
        %v594 = vld [vmem:[%s526 + $0x4] sm:$0xf]
        %v595 = vld [vmem:[%s526 + $0x8] sm:$0xf]
        %v596 = vld [vmem:[%s526 + $0xc] sm:$0xf]
        %v597 = vld [vmem:[%s529] sm:$0x1]
        %v599 = vlaneseq
        %v600 = vshrl.u32 %v599, 7
        %v601 = vsub.s32 0, %v600
        %v602 = vrot.slane %v597, %v601
        %v608 = vunpack.c.l.b16 %v593
        %v609 = vunpack.c.l.b16 %v594
        %v610 = vunpack.c.l.b16 %v595
        %v611 = vunpack.c.l.b16 %v596
        %v612 = vpack.c.b16 %v609, %v608
        %v613 = vpack.c.b16 %v611, %v610
        %v617 = vsel %vm563, %v592, 0
        %619 = vmatprep.subr.bf16.mxu0 0
        %620 = vmatpush1.bf16.msra.mxu0 0
        %621 = vmatprep.subr.bf16.mxu0 0
        %622 = vmatpush1.bf16.msra.mxu0 0
        %623 = vmatprep.subr.bf16.mxu0 0
        %624 = vmatpush1.bf16.msra.mxu0 0
        %625 = vmatprep.subr.bf16.mxu0 0
        %626 = vmatpush1.bf16.msra.mxu0 0
        %627 = vmatprep.subr.bf16.mxu0 0
        %628 = vmatpush1.bf16.msra.mxu0 0
        %629 = vmatprep.subr.bf16.mxu0 0
        %630 = vmatpush1.bf16.msra.mxu0 0
        %631 = vmatprep.subr.bf16.mxu0 0
        %632 = vmatpush1.bf16.msra.mxu0 %v613
        %633 = vmatprep.subr.bf16.mxu0 0
        %634 = vmatpush1.bf16.msra.mxu0 %v612
        %635 = vmatprep.subr.bf16.mxu0 0
        %636 = vmatpush2.bf16.msra.mxu0 0
        %637 = vmatprep.subr.bf16.mxu0 0
        %638 = vmatpush2.bf16.msra.mxu0 0
        %639 = vmatprep.subr.bf16.mxu0 0
        %640 = vmatpush2.bf16.msra.mxu0 0
        %641 = vmatprep.subr.bf16.mxu0 0
        %642 = vmatpush2.bf16.msra.mxu0 0
        %643 = vmatprep.subr.bf16.mxu0 0
        %644 = vmatpush2.bf16.msra.mxu0 0
        %645 = vmatprep.subr.bf16.mxu0 0
        %646 = vmatpush2.bf16.msra.mxu0 0
        %647 = vmatprep.subr.bf16.mxu0 0
        %648 = vmatpush2.bf16.msra.mxu0 0
        %649 = vmatprep.subr.bf16.mxu0 0
        %650 = vmatpush2.bf16.msra.mxu0 0
        %651 = vmatprep.mubr.bf16.mxu0 0
        %652 = vmatmul.mubr.bf16.gmra.mxu0 %v617
        %v653 = vpop.f32.mrf.mxu0
        %v654 = vadd.f32 %v602, %v653
        %v655 = vpop.f32.mrf.mxu0
        %v656 = vpop.f32.mrf.mxu0
        %v657 = vpop.f32.mrf.mxu0
        %658 = vdwg.mxu0
        %660 = vrot.lane.b32.xlu0 %v654, 120
        %v661 = vpop.permute.xlu0 %660
        %663 = vrot.lane.b32.xlu0 %v654, 112
        %v664 = vpop.permute.xlu0 %663
        %666 = vrot.lane.b32.xlu0 %v654, 104
        %v667 = vpop.permute.xlu0 %666
        %v669 = vpack.c.bf16 %v654, %v654
        %v670 = vpack.c.bf16 %v661, %v661
        %v671 = vpack.c.bf16 %v664, %v664
        %v672 = vpack.c.bf16 %v667, %v667
        %674 = vrot.lane.b32.xlu0 %v669, 96
        %v675 = vpop.permute.xlu0 %674
        %vm676 = vcmask 64512
        %v678 = vsel %vm676, %v669, 0
        %v681 = vsel %vm676, %v675, 0
        %683 = vmatprep.subr.bf16.mxu0 0
        %684 = vmatpush1.bf16.xpose.msra.mxu0 0
        %685 = vmatprep.subr.bf16.mxu0 0
        %686 = vmatpush1.bf16.xpose.msra.mxu0 0
        %687 = vmatprep.subr.bf16.mxu0 0
        %688 = vmatpush1.bf16.xpose.msra.mxu0 0
        %689 = vmatprep.subr.bf16.mxu0 0
        %690 = vmatpush1.bf16.xpose.msra.mxu0 0
        %691 = vmatprep.subr.bf16.mxu0 0
        %692 = vmatpush1.bf16.xpose.msra.mxu0 0
        %693 = vmatprep.subr.bf16.mxu0 0
        %694 = vmatpush1.bf16.xpose.msra.mxu0 0
        %695 = vmatprep.subr.bf16.mxu0 0
        %696 = vmatpush1.bf16.xpose.msra.mxu0 0
        %697 = vmatprep.subr.bf16.mxu0 0
        %698 = vmatpush1.bf16.xpose.msra.mxu0 %v681
        %699 = vmatprep.subr.bf16.mxu0 0
        %700 = vmatpush2.bf16.xpose.msra.mxu0 0
        %701 = vmatprep.subr.bf16.mxu0 0
        %702 = vmatpush2.bf16.xpose.msra.mxu0 0
        %703 = vmatprep.subr.bf16.mxu0 0
        %704 = vmatpush2.bf16.xpose.msra.mxu0 0
        %705 = vmatprep.subr.bf16.mxu0 0
        %706 = vmatpush2.bf16.xpose.msra.mxu0 0
        %707 = vmatprep.subr.bf16.mxu0 0
        %708 = vmatpush2.bf16.xpose.msra.mxu0 0
        %709 = vmatprep.subr.bf16.mxu0 0
        %710 = vmatpush2.bf16.xpose.msra.mxu0 0
        %711 = vmatprep.subr.bf16.mxu0 0
        %712 = vmatpush2.bf16.xpose.msra.mxu0 0
        %713 = vmatprep.subr.bf16.mxu0 0
        %714 = vmatpush2.bf16.xpose.msra.mxu0 0
        %715 = vmatprep.mubr.bf16.mxu0 0
        %716 = vmatmul.mubr.bf16.gmra.mxu0 %v678
        %v717 = vpop.f32.mrf.mxu0
        %v718 = vadd.f32 0.0, %v717
        %v719 = vpop.f32.mrf.mxu0
        %v720 = vpop.f32.mrf.mxu0
        %v721 = vpop.f32.mrf.mxu0
        %722 = vdwg.mxu0
        %724 = vrot.lane.b32.xlu0 %v670, 96
        %v725 = vpop.permute.xlu0 %724
        %v727 = vsel %vm676, %v670, 0
        %v730 = vsel %vm676, %v725, 0
        %732 = vmatprep.subr.bf16.mxu0 0
        %733 = vmatpush1.bf16.xpose.msra.mxu0 0
        %734 = vmatprep.subr.bf16.mxu0 0
        %735 = vmatpush1.bf16.xpose.msra.mxu0 0
        %736 = vmatprep.subr.bf16.mxu0 0
        %737 = vmatpush1.bf16.xpose.msra.mxu0 0
        %738 = vmatprep.subr.bf16.mxu0 0
        %739 = vmatpush1.bf16.xpose.msra.mxu0 0
        %740 = vmatprep.subr.bf16.mxu0 0
        %741 = vmatpush1.bf16.xpose.msra.mxu0 0
        %742 = vmatprep.subr.bf16.mxu0 0
        %743 = vmatpush1.bf16.xpose.msra.mxu0 0
        %744 = vmatprep.subr.bf16.mxu0 0
        %745 = vmatpush1.bf16.xpose.msra.mxu0 0
        %746 = vmatprep.subr.bf16.mxu0 0
        %747 = vmatpush1.bf16.xpose.msra.mxu0 %v730
        %748 = vmatprep.subr.bf16.mxu0 0
        %749 = vmatpush2.bf16.xpose.msra.mxu0 0
        %750 = vmatprep.subr.bf16.mxu0 0
        %751 = vmatpush2.bf16.xpose.msra.mxu0 0
        %752 = vmatprep.subr.bf16.mxu0 0
        %753 = vmatpush2.bf16.xpose.msra.mxu0 0
        %754 = vmatprep.subr.bf16.mxu0 0
        %755 = vmatpush2.bf16.xpose.msra.mxu0 0
        %756 = vmatprep.subr.bf16.mxu0 0
        %757 = vmatpush2.bf16.xpose.msra.mxu0 0
        %758 = vmatprep.subr.bf16.mxu0 0
        %759 = vmatpush2.bf16.xpose.msra.mxu0 0
        %760 = vmatprep.subr.bf16.mxu0 0
        %761 = vmatpush2.bf16.xpose.msra.mxu0 0
        %762 = vmatprep.subr.bf16.mxu0 0
        %763 = vmatpush2.bf16.xpose.msra.mxu0 0
        %764 = vmatprep.mubr.bf16.mxu0 0
        %765 = vmatmul.mubr.bf16.gmra.mxu0 %v727
        %v766 = vpop.f32.mrf.mxu0
        %v767 = vadd.f32 0.0, %v766
        %v768 = vpop.f32.mrf.mxu0
        %v769 = vpop.f32.mrf.mxu0
        %v770 = vpop.f32.mrf.mxu0
        %771 = vdwg.mxu0
        %773 = vrot.lane.b32.xlu0 %v671, 96
        %v774 = vpop.permute.xlu0 %773
        %v776 = vsel %vm676, %v671, 0
        %v779 = vsel %vm676, %v774, 0
        %781 = vmatprep.subr.bf16.mxu0 0
        %782 = vmatpush1.bf16.xpose.msra.mxu0 0
        %783 = vmatprep.subr.bf16.mxu0 0
        %784 = vmatpush1.bf16.xpose.msra.mxu0 0
        %785 = vmatprep.subr.bf16.mxu0 0
        %786 = vmatpush1.bf16.xpose.msra.mxu0 0
        %787 = vmatprep.subr.bf16.mxu0 0
        %788 = vmatpush1.bf16.xpose.msra.mxu0 0
        %789 = vmatprep.subr.bf16.mxu0 0
        %790 = vmatpush1.bf16.xpose.msra.mxu0 0
        %791 = vmatprep.subr.bf16.mxu0 0
        %792 = vmatpush1.bf16.xpose.msra.mxu0 0
        %793 = vmatprep.subr.bf16.mxu0 0
        %794 = vmatpush1.bf16.xpose.msra.mxu0 0
        %795 = vmatprep.subr.bf16.mxu0 0
        %796 = vmatpush1.bf16.xpose.msra.mxu0 %v779
        %797 = vmatprep.subr.bf16.mxu0 0
        %798 = vmatpush2.bf16.xpose.msra.mxu0 0
        %799 = vmatprep.subr.bf16.mxu0 0
        %800 = vmatpush2.bf16.xpose.msra.mxu0 0
        %801 = vmatprep.subr.bf16.mxu0 0
        %802 = vmatpush2.bf16.xpose.msra.mxu0 0
        %803 = vmatprep.subr.bf16.mxu0 0
        %804 = vmatpush2.bf16.xpose.msra.mxu0 0
        %805 = vmatprep.subr.bf16.mxu0 0
        %806 = vmatpush2.bf16.xpose.msra.mxu0 0
        %807 = vmatprep.subr.bf16.mxu0 0
        %808 = vmatpush2.bf16.xpose.msra.mxu0 0
        %809 = vmatprep.subr.bf16.mxu0 0
        %810 = vmatpush2.bf16.xpose.msra.mxu0 0
        %811 = vmatprep.subr.bf16.mxu0 0
        %812 = vmatpush2.bf16.xpose.msra.mxu0 0
        %813 = vmatprep.mubr.bf16.mxu0 0
        %814 = vmatmul.mubr.bf16.gmra.mxu0 %v776
        %v815 = vpop.f32.mrf.mxu0
        %v816 = vadd.f32 0.0, %v815
        %v817 = vpop.f32.mrf.mxu0
        %v818 = vpop.f32.mrf.mxu0
        %v819 = vpop.f32.mrf.mxu0
        %820 = vdwg.mxu0
        %822 = vrot.lane.b32.xlu0 %v672, 96
        %v823 = vpop.permute.xlu0 %822
        %v825 = vsel %vm676, %v672, 0
        %v828 = vsel %vm676, %v823, 0
        %830 = vmatprep.subr.bf16.mxu0 0
        %831 = vmatpush1.bf16.xpose.msra.mxu0 0
        %832 = vmatprep.subr.bf16.mxu0 0
        %833 = vmatpush1.bf16.xpose.msra.mxu0 0
        %834 = vmatprep.subr.bf16.mxu0 0
        %835 = vmatpush1.bf16.xpose.msra.mxu0 0
        %836 = vmatprep.subr.bf16.mxu0 0
        %837 = vmatpush1.bf16.xpose.msra.mxu0 0
        %838 = vmatprep.subr.bf16.mxu0 0
        %839 = vmatpush1.bf16.xpose.msra.mxu0 0
        %840 = vmatprep.subr.bf16.mxu0 0
        %841 = vmatpush1.bf16.xpose.msra.mxu0 0
        %842 = vmatprep.subr.bf16.mxu0 0
        %843 = vmatpush1.bf16.xpose.msra.mxu0 0
        %844 = vmatprep.subr.bf16.mxu0 0
        %845 = vmatpush1.bf16.xpose.msra.mxu0 %v828
        %846 = vmatprep.subr.bf16.mxu0 0
        %847 = vmatpush2.bf16.xpose.msra.mxu0 0
        %848 = vmatprep.subr.bf16.mxu0 0
        %849 = vmatpush2.bf16.xpose.msra.mxu0 0
        %850 = vmatprep.subr.bf16.mxu0 0
        %851 = vmatpush2.bf16.xpose.msra.mxu0 0
        %852 = vmatprep.subr.bf16.mxu0 0
        %853 = vmatpush2.bf16.xpose.msra.mxu0 0
        %854 = vmatprep.subr.bf16.mxu0 0
        %855 = vmatpush2.bf16.xpose.msra.mxu0 0
        %856 = vmatprep.subr.bf16.mxu0 0
        %857 = vmatpush2.bf16.xpose.msra.mxu0 0
        %858 = vmatprep.subr.bf16.mxu0 0
        %859 = vmatpush2.bf16.xpose.msra.mxu0 0
        %860 = vmatprep.subr.bf16.mxu0 0
        %861 = vmatpush2.bf16.xpose.msra.mxu0 0
        %862 = vmatprep.mubr.bf16.mxu0 0
        %863 = vmatmul.mubr.bf16.gmra.mxu0 %v825
        %v864 = vpop.f32.mrf.mxu0
        %v865 = vadd.f32 0.0, %v864
        %v866 = vpop.f32.mrf.mxu0
        %v867 = vpop.f32.mrf.mxu0
        %v868 = vpop.f32.mrf.mxu0
        %869 = vdwg.mxu0
        %v870 = vmul.f32 %v718, 0.35355338
        %v871 = vmul.f32 %v767, 0.35355338
        %v872 = vmul.f32 %v816, 0.35355338
        %v873 = vmul.f32 %v865, 0.35355338
        %v874 = vlaneseq
        %v875 = vshrl.u32 %v874, 7
        %v876 = vlaneseq
        %v877 = vand.u32 %v876, 127
        %vm878 = vcmp.ge.s32.totalorder %v875, %v877
        %v879 = vsel %vm878, %v870, -1e+30
        %v880 = vsel %vm878, %v871, -1e+30
        %v881 = vsel %vm878, %v872, -1e+30
        %v882 = vsel %vm878, %v873, -1e+30
        %v883 = vsel %vm676, %v879, -inf
        %884 = vmax.xlane.f32.xlu0 %v883
        %v885 = vpop.xlane.xlu0 %884
        %v886 = vsel %vm676, %v880, -inf
        %887 = vmax.xlane.f32.xlu0 %v886
        %v888 = vpop.xlane.xlu0 %887
        %v889 = vsel %vm676, %v881, -inf
        %890 = vmax.xlane.f32.xlu0 %v889
        %v891 = vpop.xlane.xlu0 %890
        %v892 = vsel %vm676, %v882, -inf
        %893 = vmax.xlane.f32.xlu0 %v892
        %v894 = vpop.xlane.xlu0 %893
        %v895 = vsub.f32 %v879, %v885
        %v896 = vsub.f32 %v880, %v888
        %v897 = vsub.f32 %v881, %v891
        %v898 = vsub.f32 %v882, %v894
        %v899 = vmul.f32 %v895, 1.442695
        %v900 = vpow.pop %v899
        %v901 = vmul.f32 %v896, 1.442695
        %v902 = vpow.pop %v901
        %v903 = vmul.f32 %v897, 1.442695
        %v904 = vpow.pop %v903
        %v905 = vmul.f32 %v898, 1.442695
        %v906 = vpow.pop %v905
        %v907 = vsel %vm676, %v900, 0.0
        %908 = vadd.xlane.f32.xlu0 %v907
        %v909 = vpop.xlane.xlu0 %908
        %v910 = vsel %vm676, %v902, 0.0
        %911 = vadd.xlane.f32.xlu0 %v910
        %v912 = vpop.xlane.xlu0 %911
        %v913 = vsel %vm676, %v904, 0.0
        %914 = vadd.xlane.f32.xlu0 %v913
        %v915 = vpop.xlane.xlu0 %914
        %v916 = vsel %vm676, %v906, 0.0
        %917 = vadd.xlane.f32.xlu0 %v916
        %v918 = vpop.xlane.xlu0 %917
        %v919 = vrcp.pop %v909
        %v920 = vrcp.pop %v912
        %v921 = vrcp.pop %v915
        %v922 = vrcp.pop %v918
        %v923 = vmul.f32 %v900, %v919
        %v924 = vmul.f32 %v902, %v920
        %v925 = vmul.f32 %v904, %v921
        %v926 = vmul.f32 %v906, %v922
        %v927 = vpack.c.bf16 %v923, %v923
        %v928 = vpack.c.bf16 %v924, %v924
        %v929 = vpack.c.bf16 %v925, %v925
        %v930 = vpack.c.bf16 %v926, %v926
        %931 = vrot.lane.b32.xlu0 %v669, 64
        %v932 = vpop.permute.xlu0 %931
        %v934 = vsel %vm676, %v927, 0
        %vm936 = vcmask 1043456
        %v938 = vsel %vm936, %v932, 0
        %940 = vmatprep.subr.bf16.mxu0 0
        %941 = vmatpush1.bf16.msra.mxu0 0
        %942 = vmatprep.subr.bf16.mxu0 0
        %943 = vmatpush1.bf16.msra.mxu0 0
        %944 = vmatprep.subr.bf16.mxu0 0
        %945 = vmatpush1.bf16.msra.mxu0 0
        %946 = vmatprep.subr.bf16.mxu0 0
        %947 = vmatpush1.bf16.msra.mxu0 0
        %948 = vmatprep.subr.bf16.mxu0 0
        %949 = vmatpush1.bf16.msra.mxu0 0
        %950 = vmatprep.subr.bf16.mxu0 0
        %951 = vmatpush1.bf16.msra.mxu0 0
        %952 = vmatprep.subr.bf16.mxu0 0
        %953 = vmatpush1.bf16.msra.mxu0 0
        %954 = vmatprep.subr.bf16.mxu0 0
        %955 = vmatpush1.bf16.msra.mxu0 %v938
        %956 = vmatprep.subr.bf16.mxu0 0
        %957 = vmatpush2.bf16.msra.mxu0 0
        %958 = vmatprep.subr.bf16.mxu0 0
        %959 = vmatpush2.bf16.msra.mxu0 0
        %960 = vmatprep.subr.bf16.mxu0 0
        %961 = vmatpush2.bf16.msra.mxu0 0
        %962 = vmatprep.subr.bf16.mxu0 0
        %963 = vmatpush2.bf16.msra.mxu0 0
        %964 = vmatprep.subr.bf16.mxu0 0
        %965 = vmatpush2.bf16.msra.mxu0 0
        %966 = vmatprep.subr.bf16.mxu0 0
        %967 = vmatpush2.bf16.msra.mxu0 0
        %968 = vmatprep.subr.bf16.mxu0 0
        %969 = vmatpush2.bf16.msra.mxu0 0
        %970 = vmatprep.subr.bf16.mxu0 0
        %971 = vmatpush2.bf16.msra.mxu0 0
        %972 = vmatprep.mubr.bf16.mxu0 0
        %973 = vmatmul.mubr.bf16.gmra.mxu0 %v934
        %v974 = vpop.f32.mrf.mxu0
        %v975 = vadd.f32 0.0, %v974
        %v976 = vpop.f32.mrf.mxu0
        %v977 = vpop.f32.mrf.mxu0
        %v978 = vpop.f32.mrf.mxu0
        %979 = vdwg.mxu0
        %980 = vrot.lane.b32.xlu0 %v670, 64
        %v981 = vpop.permute.xlu0 %980
        %v983 = vsel %vm676, %v928, 0
        %v986 = vsel %vm936, %v981, 0
        %988 = vmatprep.subr.bf16.mxu0 0
        %989 = vmatpush1.bf16.msra.mxu0 0
        %990 = vmatprep.subr.bf16.mxu0 0
        %991 = vmatpush1.bf16.msra.mxu0 0
        %992 = vmatprep.subr.bf16.mxu0 0
        %993 = vmatpush1.bf16.msra.mxu0 0
        %994 = vmatprep.subr.bf16.mxu0 0
        %995 = vmatpush1.bf16.msra.mxu0 0
        %996 = vmatprep.subr.bf16.mxu0 0
        %997 = vmatpush1.bf16.msra.mxu0 0
        %998 = vmatprep.subr.bf16.mxu0 0
        %999 = vmatpush1.bf16.msra.mxu0 0
        %1000 = vmatprep.subr.bf16.mxu0 0
        %1001 = vmatpush1.bf16.msra.mxu0 0
        %1002 = vmatprep.subr.bf16.mxu0 0
        %1003 = vmatpush1.bf16.msra.mxu0 %v986
        %1004 = vmatprep.subr.bf16.mxu0 0
        %1005 = vmatpush2.bf16.msra.mxu0 0
        %1006 = vmatprep.subr.bf16.mxu0 0
        %1007 = vmatpush2.bf16.msra.mxu0 0
        %1008 = vmatprep.subr.bf16.mxu0 0
        %1009 = vmatpush2.bf16.msra.mxu0 0
        %1010 = vmatprep.subr.bf16.mxu0 0
        %1011 = vmatpush2.bf16.msra.mxu0 0
        %1012 = vmatprep.subr.bf16.mxu0 0
        %1013 = vmatpush2.bf16.msra.mxu0 0
        %1014 = vmatprep.subr.bf16.mxu0 0
        %1015 = vmatpush2.bf16.msra.mxu0 0
        %1016 = vmatprep.subr.bf16.mxu0 0
        %1017 = vmatpush2.bf16.msra.mxu0 0
        %1018 = vmatprep.subr.bf16.mxu0 0
        %1019 = vmatpush2.bf16.msra.mxu0 0
        %1020 = vmatprep.mubr.bf16.mxu0 0
        %1021 = vmatmul.mubr.bf16.gmra.mxu0 %v983
        %v1022 = vpop.f32.mrf.mxu0
        %v1023 = vadd.f32 0.0, %v1022
        %v1024 = vpop.f32.mrf.mxu0
        %v1025 = vpop.f32.mrf.mxu0
        %v1026 = vpop.f32.mrf.mxu0
        %1027 = vdwg.mxu0
        %1028 = vrot.lane.b32.xlu0 %v671, 64
        %v1029 = vpop.permute.xlu0 %1028
        %v1031 = vsel %vm676, %v929, 0
        %v1034 = vsel %vm936, %v1029, 0
        %1036 = vmatprep.subr.bf16.mxu0 0
        %1037 = vmatpush1.bf16.msra.mxu0 0
        %1038 = vmatprep.subr.bf16.mxu0 0
        %1039 = vmatpush1.bf16.msra.mxu0 0
        %1040 = vmatprep.subr.bf16.mxu0 0
        %1041 = vmatpush1.bf16.msra.mxu0 0
        %1042 = vmatprep.subr.bf16.mxu0 0
        %1043 = vmatpush1.bf16.msra.mxu0 0
        %1044 = vmatprep.subr.bf16.mxu0 0
        %1045 = vmatpush1.bf16.msra.mxu0 0
        %1046 = vmatprep.subr.bf16.mxu0 0
        %1047 = vmatpush1.bf16.msra.mxu0 0
        %1048 = vmatprep.subr.bf16.mxu0 0
        %1049 = vmatpush1.bf16.msra.mxu0 0
        %1050 = vmatprep.subr.bf16.mxu0 0
        %1051 = vmatpush1.bf16.msra.mxu0 %v1034
        %1052 = vmatprep.subr.bf16.mxu0 0
        %1053 = vmatpush2.bf16.msra.mxu0 0
        %1054 = vmatprep.subr.bf16.mxu0 0
        %1055 = vmatpush2.bf16.msra.mxu0 0
        %1056 = vmatprep.subr.bf16.mxu0 0
        %1057 = vmatpush2.bf16.msra.mxu0 0
        %1058 = vmatprep.subr.bf16.mxu0 0
        %1059 = vmatpush2.bf16.msra.mxu0 0
        %1060 = vmatprep.subr.bf16.mxu0 0
        %1061 = vmatpush2.bf16.msra.mxu0 0
        %1062 = vmatprep.subr.bf16.mxu0 0
        %1063 = vmatpush2.bf16.msra.mxu0 0
        %1064 = vmatprep.subr.bf16.mxu0 0
        %1065 = vmatpush2.bf16.msra.mxu0 0
        %1066 = vmatprep.subr.bf16.mxu0 0
        %1067 = vmatpush2.bf16.msra.mxu0 0
        %1068 = vmatprep.mubr.bf16.mxu0 0
        %1069 = vmatmul.mubr.bf16.gmra.mxu0 %v1031
        %v1070 = vpop.f32.mrf.mxu0
        %v1071 = vadd.f32 0.0, %v1070
        %v1072 = vpop.f32.mrf.mxu0
        %v1073 = vpop.f32.mrf.mxu0
        %v1074 = vpop.f32.mrf.mxu0
        %1075 = vdwg.mxu0
        %1076 = vrot.lane.b32.xlu0 %v672, 64
        %v1077 = vpop.permute.xlu0 %1076
        %v1079 = vsel %vm676, %v930, 0
        %v1082 = vsel %vm936, %v1077, 0
        %1084 = vmatprep.subr.bf16.mxu0 0
        %1085 = vmatpush1.bf16.msra.mxu0 0
        %1086 = vmatprep.subr.bf16.mxu0 0
        %1087 = vmatpush1.bf16.msra.mxu0 0
        %1088 = vmatprep.subr.bf16.mxu0 0
        %1089 = vmatpush1.bf16.msra.mxu0 0
        %1090 = vmatprep.subr.bf16.mxu0 0
        %1091 = vmatpush1.bf16.msra.mxu0 0
        %1092 = vmatprep.subr.bf16.mxu0 0
        %1093 = vmatpush1.bf16.msra.mxu0 0
        %1094 = vmatprep.subr.bf16.mxu0 0
        %1095 = vmatpush1.bf16.msra.mxu0 0
        %1096 = vmatprep.subr.bf16.mxu0 0
        %1097 = vmatpush1.bf16.msra.mxu0 0
        %1098 = vmatprep.subr.bf16.mxu0 0
        %1099 = vmatpush1.bf16.msra.mxu0 %v1082
        %1100 = vmatprep.subr.bf16.mxu0 0
        %1101 = vmatpush2.bf16.msra.mxu0 0
        %1102 = vmatprep.subr.bf16.mxu0 0
        %1103 = vmatpush2.bf16.msra.mxu0 0
        %1104 = vmatprep.subr.bf16.mxu0 0
        %1105 = vmatpush2.bf16.msra.mxu0 0
        %1106 = vmatprep.subr.bf16.mxu0 0
        %1107 = vmatpush2.bf16.msra.mxu0 0
        %1108 = vmatprep.subr.bf16.mxu0 0
        %1109 = vmatpush2.bf16.msra.mxu0 0
        %1110 = vmatprep.subr.bf16.mxu0 0
        %1111 = vmatpush2.bf16.msra.mxu0 0
        %1112 = vmatprep.subr.bf16.mxu0 0
        %1113 = vmatpush2.bf16.msra.mxu0 0
        %1114 = vmatprep.subr.bf16.mxu0 0
        %1115 = vmatpush2.bf16.msra.mxu0 0
        %1116 = vmatprep.mubr.bf16.mxu0 0
        %1117 = vmatmul.mubr.bf16.gmra.mxu0 %v1079
        %v1118 = vpop.f32.mrf.mxu0
        %v1119 = vadd.f32 0.0, %v1118
        %v1120 = vpop.f32.mrf.mxu0
        %v1121 = vpop.f32.mrf.mxu0
        %v1122 = vpop.f32.mrf.mxu0
        %1123 = vdwg.mxu0
        %1125 = vrot.lane.b32.xlu0 %v1023, 8
        %v1126 = vpop.permute.xlu0 %1125
        %1129 = vrot.lane.b32.xlu0 %v1071, 16
        %v1130 = vpop.permute.xlu0 %1129
        %1133 = vrot.lane.b32.xlu0 %v1119, 24
        %v1134 = vpop.permute.xlu0 %1133
        %v1136 = vsel %vm676, %v975, %v1126
        %vm1137 = vcmask 130048
        %v1138 = vsel %vm1137, %v1136, %v1130
        %vm1139 = vcmask 195584
        %v1140 = vsel %vm1139, %v1138, %v1134
        %v1141 = vadd.f32 %v560, %v1140
        %v1142 = vld [vmem:[%s532] sm:$0x1]
        %v1143 = vld [vmem:[%s535] sm:$0x1]
        %v1144 = vsel %vm563, %v1141, 0.0
        %1145 = vadd.xlane.f32.xlu0 %v1144
        %v1146 = vpop.xlane.xlu0 %1145
        %v1147 = vmul.f32 %v1146, %v567
        %v1148 = vsub.f32 %v1141, %v1147
        %v1149 = vmul.f32 %v1148, %v1148
        %v1150 = vsel %vm563, %v1149, 0.0
        %1151 = vadd.xlane.f32.xlu0 %v1150
        %v1152 = vpop.xlane.xlu0 %1151
        %v1153 = vmul.f32 %v1152, %v567
        %v1154 = vadd.f32 %v1153, 1e-05
        %v1155 = vrsqrt.pop %v1154
        %v1156 = vmul.f32 %v1148, %v1155
        %v1158 = vlaneseq
        %v1159 = vshrl.u32 %v1158, 7
        %v1160 = vsub.s32 0, %v1159
        %v1161 = vrot.slane %v1142, %v1160
        %v1163 = vmul.f32 %v1156, %v1161
        %v1165 = vlaneseq
        %v1166 = vshrl.u32 %v1165, 7
        %v1167 = vsub.s32 0, %v1166
        %v1168 = vrot.slane %v1143, %v1167
        %v1170 = vadd.f32 %v1163, %v1168
        %v1171 = vpack.c.bf16 %v1170, %v1170
        %v1172 = vld [vmem:[%s540] sm:$0xf]
        %v1173 = vld [vmem:[%s540 + $0x4] sm:$0xf]
        %v1174 = vld [vmem:[%s540 + $0x8] sm:$0xf]
        %v1175 = vld [vmem:[%s540 + $0xc] sm:$0xf]
        %v1176 = vld [vmem:[%s543] sm:$0x1]
        %v1178 = vlaneseq
        %v1179 = vshrl.u32 %v1178, 7
        %v1180 = vsub.s32 0, %v1179
        %v1181 = vrot.slane %v1176, %v1180
        %v1187 = vunpack.c.l.b16 %v1172
        %v1188 = vunpack.c.l.b16 %v1173
        %v1189 = vunpack.c.l.b16 %v1174
        %v1190 = vunpack.c.l.b16 %v1175
        %v1191 = vpack.c.b16 %v1188, %v1187
        %v1192 = vpack.c.b16 %v1190, %v1189
        %v1196 = vsel %vm563, %v1171, 0
        %1198 = vmatprep.subr.bf16.mxu0 0
        %1199 = vmatpush1.bf16.msra.mxu0 0
        %1200 = vmatprep.subr.bf16.mxu0 0
        %1201 = vmatpush1.bf16.msra.mxu0 0
        %1202 = vmatprep.subr.bf16.mxu0 0
        %1203 = vmatpush1.bf16.msra.mxu0 0
        %1204 = vmatprep.subr.bf16.mxu0 0
        %1205 = vmatpush1.bf16.msra.mxu0 0
        %1206 = vmatprep.subr.bf16.mxu0 0
        %1207 = vmatpush1.bf16.msra.mxu0 0
        %1208 = vmatprep.subr.bf16.mxu0 0
        %1209 = vmatpush1.bf16.msra.mxu0 0
        %1210 = vmatprep.subr.bf16.mxu0 0
        %1211 = vmatpush1.bf16.msra.mxu0 %v1192
        %1212 = vmatprep.subr.bf16.mxu0 0
        %1213 = vmatpush1.bf16.msra.mxu0 %v1191
        %1214 = vmatprep.subr.bf16.mxu0 0
        %1215 = vmatpush2.bf16.msra.mxu0 0
        %1216 = vmatprep.subr.bf16.mxu0 0
        %1217 = vmatpush2.bf16.msra.mxu0 0
        %1218 = vmatprep.subr.bf16.mxu0 0
        %1219 = vmatpush2.bf16.msra.mxu0 0
        %1220 = vmatprep.subr.bf16.mxu0 0
        %1221 = vmatpush2.bf16.msra.mxu0 0
        %1222 = vmatprep.subr.bf16.mxu0 0
        %1223 = vmatpush2.bf16.msra.mxu0 0
        %1224 = vmatprep.subr.bf16.mxu0 0
        %1225 = vmatpush2.bf16.msra.mxu0 0
        %1226 = vmatprep.subr.bf16.mxu0 0
        %1227 = vmatpush2.bf16.msra.mxu0 0
        %1228 = vmatprep.subr.bf16.mxu0 0
        %1229 = vmatpush2.bf16.msra.mxu0 0
        %1230 = vmatprep.mubr.bf16.mxu0 0
        %1231 = vmatmul.mubr.bf16.gmra.mxu0 %v1196
        %v1232 = vpop.f32.mrf.mxu0
        %v1233 = vadd.f32 %v1181, %v1232
        %v1234 = vpop.f32.mrf.mxu0
        %v1235 = vpop.f32.mrf.mxu0
        %v1236 = vpop.f32.mrf.mxu0
        %1237 = vdwg.mxu0
        %v1238 = vmul.f32 %v1233, 0.5
        %v1239 = vmul.f32 %v1233, 0.70710677
        %v1240 = verf.f32.pop %v1239
        %v1241 = vadd.f32 %v1240, 1.0
        %v1242 = vmul.f32 %v1238, %v1241
        %v1243 = vpack.c.bf16 %v1242, %v1242
        %v1244 = vld [vmem:[%s548] sm:$0xf]
        %v1245 = vld [vmem:[%s548 + $0x4] sm:$0xf]
        %v1246 = vld [vmem:[%s548 + $0x8] sm:$0xf]
        %v1247 = vld [vmem:[%s548 + $0xc] sm:$0xf]
        %v1248 = vld [vmem:[%s548 + $0x10] sm:$0xf]
        %v1249 = vld [vmem:[%s548 + $0x14] sm:$0xf]
        %v1250 = vld [vmem:[%s548 + $0x18] sm:$0xf]
        %v1251 = vld [vmem:[%s548 + $0x1c] sm:$0xf]
        %v1252 = vld [vmem:[%s548 + $0x20] sm:$0xf]
        %v1253 = vld [vmem:[%s548 + $0x24] sm:$0xf]
        %v1254 = vld [vmem:[%s548 + $0x28] sm:$0xf]
        %v1255 = vld [vmem:[%s548 + $0x2c] sm:$0xf]
        %v1256 = vld [vmem:[%s548 + $0x30] sm:$0xf]
        %v1257 = vld [vmem:[%s548 + $0x34] sm:$0xf]
        %v1258 = vld [vmem:[%s548 + $0x38] sm:$0xf]
        %v1259 = vld [vmem:[%s548 + $0x3c] sm:$0xf]
        %v1260 = vld [vmem:[%s551] sm:$0x1]
        %v1262 = vlaneseq
        %v1263 = vshrl.u32 %v1262, 7
        %v1264 = vsub.s32 0, %v1263
        %v1265 = vrot.slane %v1260, %v1264
        %v1283 = vunpack.c.l.b16 %v1244
        %v1284 = vunpack.c.l.b16 %v1245
        %v1285 = vunpack.c.l.b16 %v1246
        %v1286 = vunpack.c.l.b16 %v1247
        %v1287 = vunpack.c.l.b16 %v1248
        %v1288 = vunpack.c.l.b16 %v1249
        %v1289 = vunpack.c.l.b16 %v1250
        %v1290 = vunpack.c.l.b16 %v1251
        %v1291 = vunpack.c.l.b16 %v1252
        %v1292 = vunpack.c.l.b16 %v1253
        %v1293 = vunpack.c.l.b16 %v1254
        %v1294 = vunpack.c.l.b16 %v1255
        %v1295 = vunpack.c.l.b16 %v1256
        %v1296 = vunpack.c.l.b16 %v1257
        %v1297 = vunpack.c.l.b16 %v1258
        %v1298 = vunpack.c.l.b16 %v1259
        %v1299 = vpack.c.b16 %v1284, %v1283
        %v1300 = vpack.c.b16 %v1286, %v1285
        %v1301 = vpack.c.b16 %v1288, %v1287
        %v1302 = vpack.c.b16 %v1290, %v1289
        %v1303 = vpack.c.b16 %v1292, %v1291
        %v1304 = vpack.c.b16 %v1294, %v1293
        %v1305 = vpack.c.b16 %v1296, %v1295
        %v1306 = vpack.c.b16 %v1298, %v1297
        %1315 = vmatprep.subr.bf16.mxu0 0
        %1316 = vmatpush1.bf16.msra.mxu0 %v1306
        %1317 = vmatprep.subr.bf16.mxu0 0
        %1318 = vmatpush1.bf16.msra.mxu0 %v1305
        %1319 = vmatprep.subr.bf16.mxu0 0
        %1320 = vmatpush1.bf16.msra.mxu0 %v1304
        %1321 = vmatprep.subr.bf16.mxu0 0
        %1322 = vmatpush1.bf16.msra.mxu0 %v1303
        %1323 = vmatprep.subr.bf16.mxu0 0
        %1324 = vmatpush1.bf16.msra.mxu0 %v1302
        %1325 = vmatprep.subr.bf16.mxu0 0
        %1326 = vmatpush1.bf16.msra.mxu0 %v1301
        %1327 = vmatprep.subr.bf16.mxu0 0
        %1328 = vmatpush1.bf16.msra.mxu0 %v1300
        %1329 = vmatprep.subr.bf16.mxu0 0
        %1330 = vmatpush1.bf16.msra.mxu0 %v1299
        %1331 = vmatprep.subr.bf16.mxu0 0
        %1332 = vmatpush2.bf16.msra.mxu0 0
        %1333 = vmatprep.subr.bf16.mxu0 0
        %1334 = vmatpush2.bf16.msra.mxu0 0
        %1335 = vmatprep.subr.bf16.mxu0 0
        %1336 = vmatpush2.bf16.msra.mxu0 0
        %1337 = vmatprep.subr.bf16.mxu0 0
        %1338 = vmatpush2.bf16.msra.mxu0 0
        %1339 = vmatprep.subr.bf16.mxu0 0
        %1340 = vmatpush2.bf16.msra.mxu0 0
        %1341 = vmatprep.subr.bf16.mxu0 0
        %1342 = vmatpush2.bf16.msra.mxu0 0
        %1343 = vmatprep.subr.bf16.mxu0 0
        %1344 = vmatpush2.bf16.msra.mxu0 0
        %1345 = vmatprep.subr.bf16.mxu0 0
        %1346 = vmatpush2.bf16.msra.mxu0 0
        %1347 = vmatprep.mubr.bf16.mxu0 0
        %1348 = vmatmul.mubr.bf16.gmra.mxu0 %v1243
        %v1349 = vpop.f32.mrf.mxu0
        %v1350 = vadd.f32 %v1265, %v1349
        %v1351 = vpop.f32.mrf.mxu0
        %v1352 = vpop.f32.mrf.mxu0
        %v1353 = vpop.f32.mrf.mxu0
        %1354 = vdwg.mxu0
        %v1355 = vadd.f32 %v1141, %v1350
        %1356 = vst.msk [vmem:[#allocation2] sm:$0xff] %vm563, %v1355
        %p1357 = scmp.eq.s32.totalorder %s30, 1
        // Predicated region
        $region69: #{tpu_custom_call.1} parent=63 // pred_check
          %p1358 = pneg %p1357
        $region70: #{tpu_custom_call.1} parent=63 // pred_check_branch
          %1360 = sbr.rel (%p1358) target = $region72
        $region71: #{tpu_custom_call.1} parent=63 // pred_region
          %1361 = vst.msk [vmem:[%s511] sm:$0xff] %vm563, %v1355
        $region72: #{tpu_custom_call.1} parent=63 // pred_fallthru
          _
        %s1362 = sand.u32 %s331, 1
        %s1363 = scalar_lea.sflag [#allocation4], %s1362
        %s1364 = sand.u32 %s331, 1
        %s1365 = smul.addr %s1364, 8
        %s1366 = scalar_lea.vmem [#allocation3], %s1365
        // Predicated region
        $region73: #{tpu_custom_call.1} parent=63 // pred_check
          %p1367 = pneg %p341
        $region74: #{tpu_custom_call.1} parent=63 // pred_check_branch
          %1369 = sbr.rel (%p1367) target = $region76
        $region75: #{tpu_custom_call.1} parent=63 // pred_region
          %s1371 = ssub.s32 128, 128
          %1372 = vsyncadd %s1363, %s1371
          %s1373 = smul.addr %s29, 128
          %s1374 = scalar_lea.hbm %s11, %s1373
          %s1376 = sshll.u32 %s1366, 4
          %s1377 = int_to_ptr.vmem [resolvable:$true] %s1376
          %1379 = dma.vmem_to_hbm [thread:$0]  %s1377, 128, %s1374, %s1363
        $region76: #{tpu_custom_call.1} parent=63 // pred_fallthru
          _
      $region64: #{tpu_custom_call.1} parent=5 // pred_fallthru
        _
      %p1380 = scmp.le.s32.totalorder 2, %s20
      // Predicated region
      $region77: #{tpu_custom_call.1} parent=5 // pred_check
        %p1381 = pneg %p1380
      $region78: #{tpu_custom_call.1} parent=5 // pred_check_branch
        %1383 = sbr.rel (%p1381) target = $region80
      $region79: #{tpu_custom_call.1} parent=5 // pred_region
        %s1384 = ssub.s32 %s20, 2
        // Predicated region
        $region81: #{tpu_custom_call.1} parent=79 // pred_check
          %p1385 = pneg %p347
        $region82: #{tpu_custom_call.1} parent=79 // pred_check_branch
          %1387 = sbr.rel (%p1385) target = $region84
        $region83: #{tpu_custom_call.1} parent=79 // pred_region
          %s1388 = sand.u32 %s332, 1
          %s1389 = scalar_lea.sflag [#allocation4], %s1388
          %s1390 = sand.u32 %s332, 1
          %s1391 = smul.addr %s1390, 8
          %s1392 = scalar_lea.vmem [#allocation3], %s1391
          %1393 = dma.done %s1389, 128
        $region84: #{tpu_custom_call.1} parent=79 // pred_fallthru
          _
      $region80: #{tpu_custom_call.1} parent=5 // pred_fallthru
        _
    $region6: #{tpu_custom_call.1} parent=1 // loop_footer
      %s24 = sadd.s32 1, %s20
    $region7: #{tpu_custom_call.1} parent=1 // loop_footer_branch
      %19 = sbr.rel target = $region3
    $region8: #{tpu_custom_call.1} parent=1 // loop_exit
      _
    %1394 = vsyncpa [#allocation4], 1
    %s1395 = scalar_lea.sflag [#allocation4], 1
    %1396 = vsyncpa %s1395, 1

</llo_original>
